<compile_context>
chip_gen: v7x
topology: tpu7x:2x2x1
jax: 0.10.0
libtpu: 0.0.40
codegen_flags: <defaults>
</compile_context>

<pallas_src>
import dataclasses
import functools
import math

import jax
import jax.numpy as jnp
from jax.experimental import pallas as pl
from jax.experimental.pallas import tpu as pltpu


def _round_up(x, m):
    return ((x + m - 1) // m) * m


def _vmem_capacity_bytes():
    """Physical VMEM per TensorCore; conservative (v7x) default if query fails."""
    try:
        return int(pltpu.get_tpu_info().vmem_capacity_bytes)
    except Exception:
        return 64 * 1024 * 1024


# --------------------------------------------------------------------------
# Kernel: one batch tile of the whole MLP, every layer resident in VMEM.
# --------------------------------------------------------------------------
def _mlp_fused_kernel(x_ref, w1_ref, wh_ref, bh_ref, wo_ref, bo_ref,
                      x1_ref, hpen_ref, *, num_hidden, compute_dtype):
    """
    x_ref   : (tm, Din_pad)        input tile          (compute_dtype)
    w1_ref  : (Din_pad, H_pad)     fc1 weight          (compute_dtype)
    wh_ref  : (L-1, H_pad, H_pad)  fc2..fcL weights    (compute_dtype)
    bh_ref  : (L, H_pad)           fc1..fcL biases     (float32)
    wo_ref  : (H_pad, Dout_pad)    fc_out weight       (compute_dtype)
    bo_ref  : (1, Dout_pad)        fc_out bias         (float32)
    x1_ref  : (tm, Dout_pad)       final output
    hpen_ref: (tm, H_pad)          activation after fc_{L-1}
    """
    L = num_hidden

    # fc1: MXU matmul with f32 accumulation; bias + ReLU on the VPU in f32
    # (v5e has no bf16 VPU/EUP -> keep the epilogue f32 on all generations).
    h = jnp.dot(x_ref[...], w1_ref[...], preferred_element_type=jnp.float32)
    h = jnp.maximum(h + bh_ref[pl.ds(0, 1), :], 0.0)
    if L == 2:  # penultimate activation is the one after fc1
        hpen_ref[...] = h.astype(hpen_ref.dtype)

    # fc2 .. fcL: statically unrolled so the LLO scheduler can interleave the
    # back-to-back small matmuls; weights are one stacked resident VMEM slab.
    for j in range(1, L):
        h = jnp.dot(h.astype(compute_dtype), wh_ref[j - 1],
                    preferred_element_type=jnp.float32)
        h = jnp.maximum(h + bh_ref[pl.ds(j, 1), :], 0.0)
        if j == L - 2:
            hpen_ref[...] = h.astype(hpen_ref.dtype)

    # fc_out: no activation.
    y = jnp.dot(h.astype(compute_dtype), wo_ref[...],
                preferred_element_type=jnp.float32)
    x1_ref[...] = (y + bo_ref[...]).astype(x1_ref.dtype)


# --------------------------------------------------------------------------
# One-time parameter packing (hoisted out of the per-call path).
# --------------------------------------------------------------------------
@dataclasses.dataclass(frozen=True)
class PackedMLP:
    w1: jax.Array          # (Din_pad, H_pad)       compute_dtype
    wh: jax.Array          # (L-1, H_pad, H_pad)    compute_dtype
    bh: jax.Array          # (L, H_pad)             float32
    wo: jax.Array          # (H_pad, Dout_pad)      compute_dtype
    bo: jax.Array          # (1, Dout_pad)          float32
    input_dim: int
    hidden_layers: tuple
    output_dim: int
    compute_dtype: object


def pack_mlp_params(params, input_dim, hidden_layers, output_dim, *,
                    compute_dtype=jnp.float32):
    """Zero-pad all feature dims to 128 multiples and stack the equal-size
    hidden weights/biases.  Zero padding is exact through matmul/bias/ReLU.
    On v7x prefer compute_dtype=jnp.bfloat16 (halves resident weight VMEM
    within the 64 MiB/TC budget and runs the MXU at its full bf16 rate)."""
    L = len(hidden_layers)
    # TODO(synk): the degenerate L==1 PyTorch forward (applies fc1 twice) is
    # not supported by the fused kernel; require at least 2 hidden layers.
    assert L >= 2, "fused kernel assumes len(hidden_layers) >= 2"
    f32, cd = jnp.float32, compute_dtype
    Din_pad = _round_up(input_dim, 128)
    H_pad = _round_up(max(hidden_layers), 128)
    Dout_pad = _round_up(output_dim, 128)

    w1, _ = params[0]
    w1_p = jnp.pad(w1.astype(cd),
                   ((0, Din_pad - input_dim), (0, H_pad - hidden_layers[0])))
    wh_p = jnp.stack([
        jnp.pad(params[j][0].astype(cd),
                ((0, H_pad - hidden_layers[j - 1]),
                 (0, H_pad - hidden_layers[j])))
        for j in range(1, L)])
    bh_p = jnp.stack([
        jnp.pad(params[j][1].reshape(-1).astype(f32),
                (0, H_pad - hidden_layers[j]))
        for j in range(L)])
    wo, bo = params[L]
    wo_p = jnp.pad(wo.astype(cd),
                   ((0, H_pad - hidden_layers[-1]), (0, Dout_pad - output_dim)))
    bo_p = jnp.pad(bo.reshape(1, -1).astype(f32),
                   ((0, 0), (0, Dout_pad - output_dim)))

    return PackedMLP(w1_p, wh_p, bh_p, wo_p, bo_p,
                     input_dim, tuple(hidden_layers), output_dim, cd)


# --------------------------------------------------------------------------
# Batch-tile selection.
# --------------------------------------------------------------------------
def _choose_tm(B_pad, sub, tm_max, fits):
    """Big tiles (fewer ~0.35us grid steps), but >=2 tiles when possible so
    the 'parallel' axis shards across both v7x TensorCores; keep large tiles
    on 256-row multiples (v6e/v7x MXU width); shrink until VMEM fits."""
    tm_max = max(sub, (tm_max // sub) * sub)
    if B_pad <= sub:
        tm = B_pad
    elif B_pad <= 2 * tm_max:
        tm = _round_up(-(-B_pad // 2), sub)
    else:
        tm = tm_max
    if tm > 256:
        tm = max(256, (tm // 256) * 256)
    tm = min(tm, tm_max, B_pad)
    while tm > sub and not fits(tm):
        tm = max(sub, ((tm // 2) // sub) * sub)
    return tm


# --------------------------------------------------------------------------
# Fused forward.
# --------------------------------------------------------------------------
def mlp_forward(packed: PackedMLP, x, *, tm_max=1024, out_dtype=jnp.float32):
    """Fused MLP forward; returns (x1, h_penultimate) like the PyTorch module."""
    hidden_layers = packed.hidden_layers
    L = len(hidden_layers)
    cd = packed.compute_dtype
    B, Din = x.shape
    assert Din == packed.input_dim
    Din_pad, H_pad = packed.w1.shape
    Dout_pad = packed.wo.shape[1]

    csize = jnp.dtype(cd).itemsize
    osize = jnp.dtype(out_dtype).itemsize
    sub = 16 if csize == 2 else 8          # bf16 packs two rows per sublane
    B_pad = _round_up(B, sub)              # NOT rounded up to the tile size

    # ---- VMEM budgeting (per TensorCore) --------------------------------
    cap = _vmem_capacity_bytes()
    budget = int(cap * 0.9)
    weight_bytes = ((Din_pad * H_pad + (L - 1) * H_pad * H_pad
                     + H_pad * Dout_pad) * csize
                    + (L * H_pad + Dout_pad) * 4)

    def act_bytes(tm):
        # double-buffered x tile + double-buffered outputs + live f32 h tile
        return tm * (2 * Din_pad * csize
                     + 2 * (Dout_pad + H_pad) * osize
                     + 2 * H_pad * 4)

    if weight_bytes + act_bytes(sub) > budget:
        # TODO(synk): stream the stacked hidden-weight slab with
        # pltpu.emit_pipeline (grid over layers) when the model is too large
        # for a single TensorCore's VMEM instead of failing here.
        raise ValueError(
            f"padded MLP weights ({weight_bytes / 2**20:.1f} MiB) exceed the "
            f"~{budget / 2**20:.0f} MiB per-core VMEM budget; use bfloat16 "
            "weights or a streamed-weight variant.")

    tm = _choose_tm(B_pad, sub, tm_max,
                    fits=lambda t: weight_bytes + act_bytes(t) <= budget)
    n_tiles = pl.cdiv(B_pad, tm)           # ragged last tile: OOB rows masked

    # Generous but capped limit (covers a double-buffered-weights fallback
    # plus compiler scratch); default scoped limits (16/32 MiB) are too low.
    vmem_limit = int(min(budget,
                         max(32 << 20,
                             2 * weight_bytes + 2 * act_bytes(tm) + (8 << 20))))

    # ---- input padding (skipped when already lane/sublane aligned) ------
    if x.dtype != cd:
        x = x.astype(cd)
    if (B, Din) != (B_pad, Din_pad):
        x = jnp.pad(x, ((0, B_pad - B), (0, Din_pad - Din)))

    kernel = functools.partial(_mlp_fused_kernel, num_hidden=L,
                               compute_dtype=cd)

    def _call(single_buffer_weights):
        # Constant-index weight/bias slabs never change across batch tiles:
        # Buffered(1) drops their second pipeline buffer -> halves weight VMEM.
        wkw = ({"pipeline_mode": pl.Buffered(1)}
               if single_buffer_weights else {})
        return pl.pallas_call(
            kernel,
            out_shape=(
                jax.ShapeDtypeStruct((B_pad, Dout_pad), out_dtype),
                jax.ShapeDtypeStruct((B_pad, H_pad), out_dtype),
            ),
            grid_spec=pltpu.PrefetchScalarGridSpec(
                num_scalar_prefetch=0,
                grid=(n_tiles,),
                in_specs=[
                    # activations: tiled over batch
                    pl.BlockSpec((tm, Din_pad), lambda i: (i, 0)),
                    # weights/biases: constant block index -> VMEM-resident
                    pl.BlockSpec((Din_pad, H_pad), lambda i: (0, 0), **wkw),
                    pl.BlockSpec((L - 1, H_pad, H_pad),
                                 lambda i: (0, 0, 0), **wkw),
                    pl.BlockSpec((L, H_pad), lambda i: (0, 0), **wkw),
                    pl.BlockSpec((H_pad, Dout_pad), lambda i: (0, 0), **wkw),
                    pl.BlockSpec((1, Dout_pad), lambda i: (0, 0), **wkw),
                ],
                out_specs=[
                    pl.BlockSpec((tm, Dout_pad), lambda i: (i, 0)),
                    pl.BlockSpec((tm, H_pad), lambda i: (i, 0)),
                ],
            ),
            compiler_params=pltpu.CompilerParams(
                dimension_semantics=("parallel",),     # megacore / v7x 2 TCs
                vmem_limit_bytes=vmem_limit),
        )(x, packed.w1, packed.wh, packed.bh, packed.wo, packed.bo)

    try:
        x1_p, hpen_p = _call(True)
    except Exception:  # pragma: no cover - jax without BlockSpec pipeline_mode
        x1_p, hpen_p = _call(False)

    H_pen = hidden_layers[-2]
    x1 = (x1_p if (B, packed.output_dim) == (B_pad, Dout_pad)
          else x1_p[:B, :packed.output_dim])
    h_pen = (hpen_p if (B, H_pen) == (B_pad, H_pad)
             else hpen_p[:B, :H_pen])
    return x1, h_pen


# --------------------------------------------------------------------------
# Init + plain-JAX reference (for the self-test).
# --------------------------------------------------------------------------
def init_mlp_params(key, input_dim, hidden_layers, output_dim,
                    dtype=jnp.float32):
    """Deterministic init matching nn.Linear's default U(-1/sqrt(fan_in), +).
    Weights stored (in_features, out_features) = PyTorch weight.T."""
    dims = [input_dim] + list(hidden_layers) + [output_dim]
    params = []
    for din, dout in zip(dims[:-1], dims[1:]):
        key, kw, kb = jax.random.split(key, 3)
        bound = 1.0 / math.sqrt(din)
        w = jax.random.uniform(kw, (din, dout), dtype, -bound, bound)
        b = jax.random.uniform(kb, (1, dout), dtype, -bound, bound)
        params.append((w, b))
    return params


def _ref_forward(params, x, hidden_layers):
    """Plain-JAX reference matching the PyTorch forward."""
    L = len(hidden_layers)
    h = jnp.maximum(x @ params[0][0] + params[0][1], 0.0)
    pen = h
    for j in range(1, L):
        h = jnp.maximum(h @ params[j][0] + params[j][1], 0.0)
        if j == L - 2:
            pen = h
    x1 = h @ params[L][0] + params[L][1]
    return x1, pen


if __name__ == "__main__":
    key = jax.random.PRNGKey(0)
    k_in, k_params = jax.random.split(key)

    batch = 8
    input_dim = 16
    hidden_layers = [32, 32, 32]
    output_dim = 8

    x = jax.random.normal(k_in, (batch, input_dim), jnp.float32)
    params = init_mlp_params(k_params, input_dim, hidden_layers, output_dim)
    r1, rpen = _ref_forward(params, x, hidden_layers)

    # --- f32 compute path: exact match to the reference -------------------
    packed_f32 = pack_mlp_params(params, input_dim, hidden_layers, output_dim,
                                 compute_dtype=jnp.float32)
    x1, x_pen = mlp_forward(packed_f32, x)
    jax.block_until_ready((x1, x_pen))
    assert x1.shape == (batch, output_dim)
    assert x_pen.shape == (batch, hidden_layers[-2])
    assert jnp.allclose(x1, r1, atol=1e-5, rtol=1e-5)
    assert jnp.allclose(x_pen, rpen, atol=1e-5, rtol=1e-5)

    # --- bf16 weight/matmul path (v6e/v7x MXU fast path), f32 accumulate --
    packed_bf16 = pack_mlp_params(params, input_dim, hidden_layers, output_dim,
                                  compute_dtype=jnp.bfloat16)
    x1_bf, x_pen_bf = mlp_forward(packed_bf16, x)
    jax.block_until_ready((x1_bf, x_pen_bf))
    assert float(jnp.max(jnp.abs(x1_bf - r1))) < 0.1
    assert float(jnp.max(jnp.abs(x_pen_bf - rpen))) < 0.1

    print("KERNEL_OK")
</pallas_src>

<mosaic_0001>
module attributes {stable_mosaic.version = 11 : i64} {
  func.func @_mlp_fused_kernel(%arg0: i32, %arg1: memref<8x128xf32, #tpu.memory_space<vmem>>, %arg2: memref<128x128xf32, #tpu.memory_space<vmem>>, %arg3: memref<2x128x128xf32, #tpu.memory_space<vmem>>, %arg4: memref<3x128xf32, #tpu.memory_space<vmem>>, %arg5: memref<128x128xf32, #tpu.memory_space<vmem>>, %arg6: memref<1x128xf32, #tpu.memory_space<vmem>>, %arg7: memref<8x128xf32, #tpu.memory_space<vmem>>, %arg8: memref<8x128xf32, #tpu.memory_space<vmem>>) attributes {dimension_semantics = [#tpu.dimension_semantics<parallel>], iteration_bounds = array<i64: 1>, scalar_prefetch = 0 : i64, scratch_operands = 0 : i64, tpu.core_type = #tpu.core_type<tc>, window_params = [{transform_indices = @transform_0, window_bounds = array<i64: 8, 128>}, {pipeline_mode = #tpu.pipeline_mode<synchronous>, transform_indices = @transform_1, window_bounds = array<i64: 128, 128>}, {pipeline_mode = #tpu.pipeline_mode<synchronous>, transform_indices = @transform_2, window_bounds = array<i64: 2, 128, 128>}, {pipeline_mode = #tpu.pipeline_mode<synchronous>, transform_indices = @transform_3, window_bounds = array<i64: 3, 128>}, {pipeline_mode = #tpu.pipeline_mode<synchronous>, transform_indices = @transform_4, window_bounds = array<i64: 128, 128>}, {pipeline_mode = #tpu.pipeline_mode<synchronous>, transform_indices = @transform_5, window_bounds = array<i64: 1, 128>}, {transform_indices = @transform_6, window_bounds = array<i64: 8, 128>}, {transform_indices = @transform_7, window_bounds = array<i64: 8, 128>}]} {
    %c0 = arith.constant 0 : index
    %c0_0 = arith.constant 0 : index
    %0 = vector.load %arg1[%c0, %c0_0] : memref<8x128xf32, #tpu.memory_space<vmem>>, vector<8x128xf32>
    %c0_1 = arith.constant 0 : index
    %c0_2 = arith.constant 0 : index
    %1 = vector.load %arg2[%c0_1, %c0_2] : memref<128x128xf32, #tpu.memory_space<vmem>>, vector<128x128xf32>
    %cst = arith.constant dense<0.000000e+00> : vector<8x128xf32>
    %2 = tpu.matmul %0, %1, %cst {dimension_numbers = #tpu.dot_dimension_numbers<[1], [0], [0], [1], [0, 0, 1, 1], [], []>} : vector<8x128xf32>, vector<128x128xf32>, vector<8x128xf32> -> vector<8x128xf32>
    %c0_3 = arith.constant 0 : index
    %c0_4 = arith.constant 0 : index
    %3 = vector.load %arg4[%c0_3, %c0_4] : memref<3x128xf32, #tpu.memory_space<vmem>>, vector<1x128xf32>
    %4 = vector.broadcast %3 : vector<1x128xf32> to vector<8x128xf32>
    %5 = arith.addf %2, %4 : vector<8x128xf32>
    %cst_5 = arith.constant 0.000000e+00 : f32
    %6 = vector.broadcast %cst_5 : f32 to vector<8x128xf32>
    %7 = arith.maximumf %5, %6 : vector<8x128xf32>
    %c0_6 = arith.constant 0 : index
    %c0_7 = arith.constant 0 : index
    %c0_8 = arith.constant 0 : index
    %8 = vector.load %arg3[%c0_6, %c0_7, %c0_8] : memref<2x128x128xf32, #tpu.memory_space<vmem>>, vector<1x128x128xf32>
    %9 = vector.shape_cast %8 : vector<1x128x128xf32> to vector<128x128xf32>
    %cst_9 = arith.constant dense<0.000000e+00> : vector<8x128xf32>
    %10 = tpu.matmul %7, %9, %cst_9 {dimension_numbers = #tpu.dot_dimension_numbers<[1], [0], [0], [1], [0, 0, 1, 1], [], []>} : vector<8x128xf32>, vector<128x128xf32>, vector<8x128xf32> -> vector<8x128xf32>
    %c1 = arith.constant 1 : index
    %c0_10 = arith.constant 0 : index
    %11 = vector.load %arg4[%c1, %c0_10] : memref<3x128xf32, #tpu.memory_space<vmem>>, vector<1x128xf32>
    %12 = vector.broadcast %11 : vector<1x128xf32> to vector<8x128xf32>
    %13 = arith.addf %10, %12 : vector<8x128xf32>
    %cst_11 = arith.constant 0.000000e+00 : f32
    %14 = vector.broadcast %cst_11 : f32 to vector<8x128xf32>
    %15 = arith.maximumf %13, %14 : vector<8x128xf32>
    %c0_12 = arith.constant 0 : index
    %c0_13 = arith.constant 0 : index
    %16 = vector.load %arg8[%c0_12, %c0_13] : memref<8x128xf32, #tpu.memory_space<vmem>>, vector<8x128xf32>
    tpu.vector_store %arg8[%c0_12, %c0_13], %15 {strides = array<i32>} : memref<8x128xf32, #tpu.memory_space<vmem>>, vector<8x128xf32>,
    %c1_14 = arith.constant 1 : index
    %c0_15 = arith.constant 0 : index
    %c0_16 = arith.constant 0 : index
    %17 = vector.load %arg3[%c1_14, %c0_15, %c0_16] : memref<2x128x128xf32, #tpu.memory_space<vmem>>, vector<1x128x128xf32>
    %18 = vector.shape_cast %17 : vector<1x128x128xf32> to vector<128x128xf32>
    %cst_17 = arith.constant dense<0.000000e+00> : vector<8x128xf32>
    %19 = tpu.matmul %15, %18, %cst_17 {dimension_numbers = #tpu.dot_dimension_numbers<[1], [0], [0], [1], [0, 0, 1, 1], [], []>} : vector<8x128xf32>, vector<128x128xf32>, vector<8x128xf32> -> vector<8x128xf32>
    %c2 = arith.constant 2 : index
    %c0_18 = arith.constant 0 : index
    %20 = vector.load %arg4[%c2, %c0_18] : memref<3x128xf32, #tpu.memory_space<vmem>>, vector<1x128xf32>
    %21 = vector.broadcast %20 : vector<1x128xf32> to vector<8x128xf32>
    %22 = arith.addf %19, %21 : vector<8x128xf32>
    %cst_19 = arith.constant 0.000000e+00 : f32
    %23 = vector.broadcast %cst_19 : f32 to vector<8x128xf32>
    %24 = arith.maximumf %22, %23 : vector<8x128xf32>
    %c0_20 = arith.constant 0 : index
    %c0_21 = arith.constant 0 : index
    %25 = vector.load %arg5[%c0_20, %c0_21] : memref<128x128xf32, #tpu.memory_space<vmem>>, vector<128x128xf32>
    %cst_22 = arith.constant dense<0.000000e+00> : vector<8x128xf32>
    %26 = tpu.matmul %24, %25, %cst_22 {dimension_numbers = #tpu.dot_dimension_numbers<[1], [0], [0], [1], [0, 0, 1, 1], [], []>} : vector<8x128xf32>, vector<128x128xf32>, vector<8x128xf32> -> vector<8x128xf32>
    %c0_23 = arith.constant 0 : index
    %c0_24 = arith.constant 0 : index
    %27 = vector.load %arg6[%c0_23, %c0_24] : memref<1x128xf32, #tpu.memory_space<vmem>>, vector<1x128xf32>
    %28 = vector.broadcast %27 : vector<1x128xf32> to vector<8x128xf32>
    %29 = arith.addf %26, %28 : vector<8x128xf32>
    %c0_25 = arith.constant 0 : index
    %c0_26 = arith.constant 0 : index
    %30 = vector.load %arg7[%c0_25, %c0_26] : memref<8x128xf32, #tpu.memory_space<vmem>>, vector<8x128xf32>
    tpu.vector_store %arg7[%c0_25, %c0_26], %29 {strides = array<i32>} : memref<8x128xf32, #tpu.memory_space<vmem>>, vector<8x128xf32>,
    return
  }
  func.func @transform_0(%arg0: i32) -> (i32, i32) {
    %c0_i32 = arith.constant 0 : i32
    %c0_i32_0 = arith.constant 0 : i32
    return %arg0, %c0_i32 : i32, i32
  }
  func.func @transform_1(%arg0: i32) -> (i32, i32) {
    %c0_i32 = arith.constant 0 : i32
    %c0_i32_0 = arith.constant 0 : i32
    %c0_i32_1 = arith.constant 0 : i32
    return %c0_i32, %c0_i32_0 : i32, i32
  }
  func.func @transform_2(%arg0: i32) -> (i32, i32, i32) {
    %c0_i32 = arith.constant 0 : i32
    %c0_i32_0 = arith.constant 0 : i32
    %c0_i32_1 = arith.constant 0 : i32
    %c0_i32_2 = arith.constant 0 : i32
    return %c0_i32, %c0_i32_0, %c0_i32_1 : i32, i32, i32
  }
  func.func @transform_3(%arg0: i32) -> (i32, i32) {
    %c0_i32 = arith.constant 0 : i32
    %c0_i32_0 = arith.constant 0 : i32
    %c0_i32_1 = arith.constant 0 : i32
    return %c0_i32, %c0_i32_0 : i32, i32
  }
  func.func @transform_4(%arg0: i32) -> (i32, i32) {
    %c0_i32 = arith.constant 0 : i32
    %c0_i32_0 = arith.constant 0 : i32
    %c0_i32_1 = arith.constant 0 : i32
    return %c0_i32, %c0_i32_0 : i32, i32
  }
  func.func @transform_5(%arg0: i32) -> (i32, i32) {
    %c0_i32 = arith.constant 0 : i32
    %c0_i32_0 = arith.constant 0 : i32
    %c0_i32_1 = arith.constant 0 : i32
    return %c0_i32, %c0_i32_0 : i32, i32
  }
  func.func @transform_6(%arg0: i32) -> (i32, i32) {
    %c0_i32 = arith.constant 0 : i32
    %c0_i32_0 = arith.constant 0 : i32
    return %arg0, %c0_i32 : i32, i32
  }
  func.func @transform_7(%arg0: i32) -> (i32, i32) {
    %c0_i32 = arith.constant 0 : i32
    %c0_i32_0 = arith.constant 0 : i32
    return %arg0, %c0_i32 : i32, i32
  }
}

module attributes {stable_mosaic.version = 11 : i64} {
  func.func @_mlp_fused_kernel(%arg0: i32, %arg1: memref<8x128xf32, #tpu.memory_space<vmem>>, %arg2: memref<128x128xf32, #tpu.memory_space<vmem>>, %arg3: memref<2x128x128xf32, #tpu.memory_space<vmem>>, %arg4: memref<3x128xf32, #tpu.memory_space<vmem>>, %arg5: memref<128x128xf32, #tpu.memory_space<vmem>>, %arg6: memref<1x128xf32, #tpu.memory_space<vmem>>, %arg7: memref<8x128xf32, #tpu.memory_space<vmem>>, %arg8: memref<8x128xf32, #tpu.memory_space<vmem>>) attributes {dimension_semantics = [#tpu.dimension_semantics<parallel>], iteration_bounds = array<i64: 1>, scalar_prefetch = 0 : i64, scratch_operands = 0 : i64, tpu.core_type = #tpu.core_type<tc>, window_params = [{transform_indices = @transform_0, window_bounds = array<i64: 8, 128>}, {pipeline_mode = #tpu.pipeline_mode<synchronous>, transform_indices = @transform_1, window_bounds = array<i64: 128, 128>}, {pipeline_mode = #tpu.pipeline_mode<synchronous>, transform_indices = @transform_2, window_bounds = array<i64: 2, 128, 128>}, {pipeline_mode = #tpu.pipeline_mode<synchronous>, transform_indices = @transform_3, window_bounds = array<i64: 3, 128>}, {pipeline_mode = #tpu.pipeline_mode<synchronous>, transform_indices = @transform_4, window_bounds = array<i64: 128, 128>}, {pipeline_mode = #tpu.pipeline_mode<synchronous>, transform_indices = @transform_5, window_bounds = array<i64: 1, 128>}, {transform_indices = @transform_6, window_bounds = array<i64: 8, 128>}, {transform_indices = @transform_7, window_bounds = array<i64: 8, 128>}]} {
    %c0 = arith.constant 0 : index
    %c0_0 = arith.constant 0 : index
    %0 = vector.load %arg1[%c0, %c0_0] : memref<8x128xf32, #tpu.memory_space<vmem>>, vector<8x128xf32>
    %c0_1 = arith.constant 0 : index
    %c0_2 = arith.constant 0 : index
    %1 = vector.load %arg2[%c0_1, %c0_2] : memref<128x128xf32, #tpu.memory_space<vmem>>, vector<128x128xf32>
    %cst = arith.constant dense<0.000000e+00> : vector<8x128xf32>
    %2 = tpu.matmul %0, %1, %cst {dimension_numbers = #tpu.dot_dimension_numbers<[1], [0], [0], [1], [0, 0, 1, 1], [], []>} : vector<8x128xf32>, vector<128x128xf32>, vector<8x128xf32> -> vector<8x128xf32>
    %c0_3 = arith.constant 0 : index
    %c0_4 = arith.constant 0 : index
    %3 = vector.load %arg4[%c0_3, %c0_4] : memref<3x128xf32, #tpu.memory_space<vmem>>, vector<1x128xf32>
    %4 = vector.broadcast %3 : vector<1x128xf32> to vector<8x128xf32>
    %5 = arith.addf %2, %4 : vector<8x128xf32>
    %cst_5 = arith.constant 0.000000e+00 : f32
    %6 = vector.broadcast %cst_5 : f32 to vector<8x128xf32>
    %7 = arith.maximumf %5, %6 : vector<8x128xf32>
    %c0_6 = arith.constant 0 : index
    %c0_7 = arith.constant 0 : index
    %c0_8 = arith.constant 0 : index
    %8 = vector.load %arg3[%c0_6, %c0_7, %c0_8] : memref<2x128x128xf32, #tpu.memory_space<vmem>>, vector<1x128x128xf32>
    %9 = vector.shape_cast %8 : vector<1x128x128xf32> to vector<128x128xf32>
    %cst_9 = arith.constant dense<0.000000e+00> : vector<8x128xf32>
    %10 = tpu.matmul %7, %9, %cst_9 {dimension_numbers = #tpu.dot_dimension_numbers<[1], [0], [0], [1], [0, 0, 1, 1], [], []>} : vector<8x128xf32>, vector<128x128xf32>, vector<8x128xf32> -> vector<8x128xf32>
    %c1 = arith.constant 1 : index
    %c0_10 = arith.constant 0 : index
    %11 = vector.load %arg4[%c1, %c0_10] : memref<3x128xf32, #tpu.memory_space<vmem>>, vector<1x128xf32>
    %12 = vector.broadcast %11 : vector<1x128xf32> to vector<8x128xf32>
    %13 = arith.addf %10, %12 : vector<8x128xf32>
    %cst_11 = arith.constant 0.000000e+00 : f32
    %14 = vector.broadcast %cst_11 : f32 to vector<8x128xf32>
    %15 = arith.maximumf %13, %14 : vector<8x128xf32>
    %c0_12 = arith.constant 0 : index
    %c0_13 = arith.constant 0 : index
    %16 = vector.load %arg8[%c0_12, %c0_13] : memref<8x128xf32, #tpu.memory_space<vmem>>, vector<8x128xf32>
    tpu.vector_store %arg8[%c0_12, %c0_13], %15 {strides = array<i32>} : memref<8x128xf32, #tpu.memory_space<vmem>>, vector<8x128xf32>,
    %c1_14 = arith.constant 1 : index
    %c0_15 = arith.constant 0 : index
    %c0_16 = arith.constant 0 : index
    %17 = vector.load %arg3[%c1_14, %c0_15, %c0_16] : memref<2x128x128xf32, #tpu.memory_space<vmem>>, vector<1x128x128xf32>
    %18 = vector.shape_cast %17 : vector<1x128x128xf32> to vector<128x128xf32>
    %cst_17 = arith.constant dense<0.000000e+00> : vector<8x128xf32>
    %19 = tpu.matmul %15, %18, %cst_17 {dimension_numbers = #tpu.dot_dimension_numbers<[1], [0], [0], [1], [0, 0, 1, 1], [], []>} : vector<8x128xf32>, vector<128x128xf32>, vector<8x128xf32> -> vector<8x128xf32>
    %c2 = arith.constant 2 : index
    %c0_18 = arith.constant 0 : index
    %20 = vector.load %arg4[%c2, %c0_18] : memref<3x128xf32, #tpu.memory_space<vmem>>, vector<1x128xf32>
    %21 = vector.broadcast %20 : vector<1x128xf32> to vector<8x128xf32>
    %22 = arith.addf %19, %21 : vector<8x128xf32>
    %cst_19 = arith.constant 0.000000e+00 : f32
    %23 = vector.broadcast %cst_19 : f32 to vector<8x128xf32>
    %24 = arith.maximumf %22, %23 : vector<8x128xf32>
    %c0_20 = arith.constant 0 : index
    %c0_21 = arith.constant 0 : index
    %25 = vector.load %arg5[%c0_20, %c0_21] : memref<128x128xf32, #tpu.memory_space<vmem>>, vector<128x128xf32>
    %cst_22 = arith.constant dense<0.000000e+00> : vector<8x128xf32>
    %26 = tpu.matmul %24, %25, %cst_22 {dimension_numbers = #tpu.dot_dimension_numbers<[1], [0], [0], [1], [0, 0, 1, 1], [], []>} : vector<8x128xf32>, vector<128x128xf32>, vector<8x128xf32> -> vector<8x128xf32>
    %c0_23 = arith.constant 0 : index
    %c0_24 = arith.constant 0 : index
    %27 = vector.load %arg6[%c0_23, %c0_24] : memref<1x128xf32, #tpu.memory_space<vmem>>, vector<1x128xf32>
    %28 = vector.broadcast %27 : vector<1x128xf32> to vector<8x128xf32>
    %29 = arith.addf %26, %28 : vector<8x128xf32>
    %c0_25 = arith.constant 0 : index
    %c0_26 = arith.constant 0 : index
    %30 = vector.load %arg7[%c0_25, %c0_26] : memref<8x128xf32, #tpu.memory_space<vmem>>, vector<8x128xf32>
    tpu.vector_store %arg7[%c0_25, %c0_26], %29 {strides = array<i32>} : memref<8x128xf32, #tpu.memory_space<vmem>>, vector<8x128xf32>,
    return
  }
  func.func @transform_0(%arg0: i32) -> (i32, i32) {
    %c0_i32 = arith.constant 0 : i32
    %c0_i32_0 = arith.constant 0 : i32
    return %arg0, %c0_i32 : i32, i32
  }
  func.func @transform_1(%arg0: i32) -> (i32, i32) {
    %c0_i32 = arith.constant 0 : i32
    %c0_i32_0 = arith.constant 0 : i32
    %c0_i32_1 = arith.constant 0 : i32
    return %c0_i32, %c0_i32_0 : i32, i32
  }
  func.func @transform_2(%arg0: i32) -> (i32, i32, i32) {
    %c0_i32 = arith.constant 0 : i32
    %c0_i32_0 = arith.constant 0 : i32
    %c0_i32_1 = arith.constant 0 : i32
    %c0_i32_2 = arith.constant 0 : i32
    return %c0_i32, %c0_i32_0, %c0_i32_1 : i32, i32, i32
  }
  func.func @transform_3(%arg0: i32) -> (i32, i32) {
    %c0_i32 = arith.constant 0 : i32
    %c0_i32_0 = arith.constant 0 : i32
    %c0_i32_1 = arith.constant 0 : i32
    return %c0_i32, %c0_i32_0 : i32, i32
  }
  func.func @transform_4(%arg0: i32) -> (i32, i32) {
    %c0_i32 = arith.constant 0 : i32
    %c0_i32_0 = arith.constant 0 : i32
    %c0_i32_1 = arith.constant 0 : i32
    return %c0_i32, %c0_i32_0 : i32, i32
  }
  func.func @transform_5(%arg0: i32) -> (i32, i32) {
    %c0_i32 = arith.constant 0 : i32
    %c0_i32_0 = arith.constant 0 : i32
    %c0_i32_1 = arith.constant 0 : i32
    return %c0_i32, %c0_i32_0 : i32, i32
  }
  func.func @transform_6(%arg0: i32) -> (i32, i32) {
    %c0_i32 = arith.constant 0 : i32
    %c0_i32_0 = arith.constant 0 : i32
    return %arg0, %c0_i32 : i32, i32
  }
  func.func @transform_7(%arg0: i32) -> (i32, i32) {
    %c0_i32 = arith.constant 0 : i32
    %c0_i32_0 = arith.constant 0 : i32
    return %arg0, %c0_i32 : i32, i32
  }
}

</mosaic_0001>

<llo_original>
// kernel: tpu_custom_call.1
$region0: #{tpu_custom_call.1}
  #allocation0 [shape = 'u32[]', space=smem, size = 0x4, offset = 0x4, fixed_abs, tag = 'smem constant byte address 0x4 - core index']
  #allocation1 [shape = 'u32[144,128]{1,0:T(1,128)}', space=vmem, size = 0x12000, scoped, tag = 'internal scratch']
  %s0 = inlined_call_operand.hbm [shape: f32[8,128], index: 0, kind: input, shape index: {}]
  %s1 = inlined_call_operand.hbm [shape: f32[128,128], index: 1, kind: input, shape index: {}]
  %s2 = inlined_call_operand.hbm [shape: f32[2,128,128], index: 2, kind: input, shape index: {}]
  %s3 = inlined_call_operand.vmem [shape: f32[3,128], index: 3, kind: input, shape index: {}]
  %s4 = inlined_call_operand.hbm [shape: f32[128,128], index: 4, kind: input, shape index: {}]
  %s5 = inlined_call_operand.vmem [shape: f32[1,128], index: 5, kind: input, shape index: {}]
  %s6 = inlined_call_operand.hbm [shape: f32[8,128], index: 6, kind: output, shape index: {0}]
  %s7 = inlined_call_operand.hbm [shape: f32[8,128], index: 7, kind: output, shape index: {1}]
  %8 = xla_tuple %s6, %s7
  %s9 = sld [smem:[#allocation0]]
  $region58: #{tpu_custom_call.1} parent=0
    _
  %s11 = ssub.s32 1, %s9
  %s12 = scalar_select 0, %s11, %s9
  $region1: #{tpu_custom_call.1} parent=0
    #allocation2 [shape = 'u8[4096]{0}', space=vmem, size = 0x1000, scoped, tag = 'input window, operand 0, single buffered']
    #allocation3 [shape = 's32[1]{0}', space=sflag, size = 0x4, scoped, tag = 'scoped memory for tpu_custom_call.1']
    #allocation4 [shape = 's32[1]{0}', space=sflag, size = 0x4, scoped, tag = 'scoped memory for tpu_custom_call.1']
    #allocation5 [shape = 'u8[65536]{0}', space=vmem, size = 0x10000, scoped, tag = 'input window, operand 1, single buffered']
    #allocation6 [shape = 's32[1]{0}', space=sflag, size = 0x4, scoped, tag = 'scoped memory for tpu_custom_call.1']
    #allocation7 [shape = 'u8[131072]{0}', space=vmem, size = 0x20000, scoped, tag = 'input window, operand 2, single buffered']
    #allocation8 [shape = 'u8[65536]{0}', space=vmem, size = 0x10000, scoped, tag = 'input window, operand 4, single buffered']
    #allocation9 [shape = 's32[1]{0}', space=sflag, size = 0x4, scoped, tag = 'scoped memory for tpu_custom_call.1']
    #allocation10 [shape = 'u8[4096]{0}', space=vmem, size = 0x1000, scoped, tag = 'output window, operand 0, single buffered']
    #allocation11 [shape = 'u8[4096]{0}', space=vmem, size = 0x1000, scoped, tag = 'output window, operand 1, single buffered']
    #allocation12 [shape = 's32[1]{0}', space=sflag, size = 0x4, scoped, tag = 'scoped memory for tpu_custom_call.1']
    %13 = vsyncpa [#allocation3], 0
    %14 = vsyncpa [#allocation6], 0
    %15 = vsyncpa [#allocation9], 0
    %16 = vsyncpa [#allocation4], 0
    %17 = vsyncpa [#allocation12], 0
    // Predicated region
    $region2: #{tpu_custom_call.1} parent=1 // pred_check
      _
    $region3: #{tpu_custom_call.1} parent=1 // pred_check_branch
      %19 = sbr.rel (0) target = $region5
    $region4: #{tpu_custom_call.1} parent=1 // pred_region
      %s21 = ssub.s32 128, 128
      %22 = vsyncadd [#allocation3], %s21
      %s24 = sshll.u32 [#allocation2], 4
      %s25 = int_to_ptr.vmem [resolvable:$true] %s24
      %27 = dma.hbm_to_vmem [thread:$0]  %s0, 128, %s25, [#allocation3]
    $region5: #{tpu_custom_call.1} parent=1 // pred_fallthru
      _
    // Predicated region
    $region6: #{tpu_custom_call.1} parent=1 // pred_check
      _
    $region7: #{tpu_custom_call.1} parent=1 // pred_check_branch
      %29 = sbr.rel (0) target = $region9
    $region8: #{tpu_custom_call.1} parent=1 // pred_region
      %s31 = ssub.s32 2048, 2048
      %32 = vsyncadd [#allocation6], %s31
      %s33 = sshll.u32 [#allocation5], 4
      %s34 = int_to_ptr.vmem [resolvable:$true] %s33
      %39 = dma.hbm_to_vmem [thread:$0]  %s1, 2048, %s34, [#allocation6], 128, 128, 8
    $region9: #{tpu_custom_call.1} parent=1 // pred_fallthru
      _
    // Predicated region
    $region10: #{tpu_custom_call.1} parent=1 // pred_check
      _
    $region11: #{tpu_custom_call.1} parent=1 // pred_check_branch
      %41 = sbr.rel (0) target = $region13
    $region12: #{tpu_custom_call.1} parent=1 // pred_region
      %s43 = ssub.s32 4096, 4096
      %44 = vsyncadd [#allocation6], %s43
      %s45 = sshll.u32 [#allocation7], 4
      %s46 = int_to_ptr.vmem [resolvable:$true] %s45
      %51 = dma.hbm_to_vmem [thread:$0]  %s2, 4096, %s46, [#allocation6], 128, 128, 8
    $region13: #{tpu_custom_call.1} parent=1 // pred_fallthru
      _
    // Predicated region
    $region14: #{tpu_custom_call.1} parent=1 // pred_check
      _
    $region15: #{tpu_custom_call.1} parent=1 // pred_check_branch
      %53 = sbr.rel (0) target = $region17
    $region16: #{tpu_custom_call.1} parent=1 // pred_region
      _
    $region17: #{tpu_custom_call.1} parent=1 // pred_fallthru
      _
    // Predicated region
    $region18: #{tpu_custom_call.1} parent=1 // pred_check
      _
    $region19: #{tpu_custom_call.1} parent=1 // pred_check_branch
      %55 = sbr.rel (0) target = $region21
    $region20: #{tpu_custom_call.1} parent=1 // pred_region
      %s57 = ssub.s32 2048, 2048
      %58 = vsyncadd [#allocation9], %s57
      %s59 = sshll.u32 [#allocation8], 4
      %s60 = int_to_ptr.vmem [resolvable:$true] %s59
      %65 = dma.hbm_to_vmem [thread:$0]  %s4, 2048, %s60, [#allocation9], 128, 128, 8
    $region21: #{tpu_custom_call.1} parent=1 // pred_fallthru
      _
    // Predicated region
    $region22: #{tpu_custom_call.1} parent=1 // pred_check
      _
    $region23: #{tpu_custom_call.1} parent=1 // pred_check_branch
      %67 = sbr.rel (0) target = $region25
    $region24: #{tpu_custom_call.1} parent=1 // pred_region
      _
    $region25: #{tpu_custom_call.1} parent=1 // pred_fallthru
      _
    // Predicated region
    $region26: #{tpu_custom_call.1} parent=1 // pred_check
      _
    $region27: #{tpu_custom_call.1} parent=1 // pred_check_branch
      %69 = sbr.rel (0) target = $region29
    $region28: #{tpu_custom_call.1} parent=1 // pred_region
      %70 = dma.done [#allocation3], 128
    $region29: #{tpu_custom_call.1} parent=1 // pred_fallthru
      _
    // Predicated region
    $region30: #{tpu_custom_call.1} parent=1 // pred_check
      _
    $region31: #{tpu_custom_call.1} parent=1 // pred_check_branch
      %72 = sbr.rel (0) target = $region33
    $region32: #{tpu_custom_call.1} parent=1 // pred_region
      %73 = dma.done [#allocation6], 2048
    $region33: #{tpu_custom_call.1} parent=1 // pred_fallthru
      _
    // Predicated region
    $region34: #{tpu_custom_call.1} parent=1 // pred_check
      _
    $region35: #{tpu_custom_call.1} parent=1 // pred_check_branch
      %75 = sbr.rel (0) target = $region37
    $region36: #{tpu_custom_call.1} parent=1 // pred_region
      %76 = dma.done [#allocation6], 4096
    $region37: #{tpu_custom_call.1} parent=1 // pred_fallthru
      _
    // Predicated region
    $region38: #{tpu_custom_call.1} parent=1 // pred_check
      _
    $region39: #{tpu_custom_call.1} parent=1 // pred_check_branch
      %78 = sbr.rel (0) target = $region41
    $region40: #{tpu_custom_call.1} parent=1 // pred_region
      %79 = dma.done [#allocation9], 2048
    $region41: #{tpu_custom_call.1} parent=1 // pred_fallthru
      _
    %v80 = vld [vmem:[#allocation2] sm:$0xff]
    %v81 = vld [vmem:[#allocation5] sm:$0xff]
    %v82 = vld [vmem:[#allocation5 + $0x8] sm:$0xff]
    %v83 = vld [vmem:[#allocation5 + $0x10] sm:$0xff]
    %v84 = vld [vmem:[#allocation5 + $0x18] sm:$0xff]
    %v85 = vld [vmem:[#allocation5 + $0x20] sm:$0xff]
    %v86 = vld [vmem:[#allocation5 + $0x28] sm:$0xff]
    %v87 = vld [vmem:[#allocation5 + $0x30] sm:$0xff]
    %v88 = vld [vmem:[#allocation5 + $0x38] sm:$0xff]
    %v89 = vld [vmem:[#allocation5 + $0x40] sm:$0xff]
    %v90 = vld [vmem:[#allocation5 + $0x48] sm:$0xff]
    %v91 = vld [vmem:[#allocation5 + $0x50] sm:$0xff]
    %v92 = vld [vmem:[#allocation5 + $0x58] sm:$0xff]
    %v93 = vld [vmem:[#allocation5 + $0x60] sm:$0xff]
    %v94 = vld [vmem:[#allocation5 + $0x68] sm:$0xff]
    %v95 = vld [vmem:[#allocation5 + $0x70] sm:$0xff]
    %v96 = vld [vmem:[#allocation5 + $0x78] sm:$0xff]
    %v97 = vld [vmem:[%s3] sm:$0x1]
    %v98 = vlaneseq
    %v99 = vshrl.u32 %v98, 7
    %v100 = vsub.s32 0, %v99
    %v101 = vrot.slane %v97, %v100
    %102 = vmatprep.subr.mxu0 0.0
    %103 = vmatpush1.msra.mxu0 %v81
    %104 = vmatprep.subr.mxu0 0.0
    %105 = vmatpush1.msra.mxu0 %v82
    %106 = vmatprep.subr.mxu0 0.0
    %107 = vmatpush1.msra.mxu0 %v83
    %108 = vmatprep.subr.mxu0 0.0
    %109 = vmatpush1.msra.mxu0 %v84
    %110 = vmatprep.subr.mxu0 0.0
    %111 = vmatpush1.msra.mxu0 %v85
    %112 = vmatprep.subr.mxu0 0.0
    %113 = vmatpush1.msra.mxu0 %v86
    %114 = vmatprep.subr.mxu0 0.0
    %115 = vmatpush1.msra.mxu0 %v87
    %116 = vmatprep.subr.mxu0 0.0
    %117 = vmatpush1.msra.mxu0 %v88
    %118 = vmatprep.subr.mxu0 0.0
    %119 = vmatpush1.msra.mxu0 %v89
    %120 = vmatprep.subr.mxu0 0.0
    %121 = vmatpush1.msra.mxu0 %v90
    %122 = vmatprep.subr.mxu0 0.0
    %123 = vmatpush1.msra.mxu0 %v91
    %124 = vmatprep.subr.mxu0 0.0
    %125 = vmatpush1.msra.mxu0 %v92
    %126 = vmatprep.subr.mxu0 0.0
    %127 = vmatpush1.msra.mxu0 %v93
    %128 = vmatprep.subr.mxu0 0.0
    %129 = vmatpush1.msra.mxu0 %v94
    %130 = vmatprep.subr.mxu0 0.0
    %131 = vmatpush1.msra.mxu0 %v95
    %132 = vmatprep.subr.mxu0 0.0
    %133 = vmatpush1.msra.mxu0 %v96
    %134 = vmatprep.subr.mxu0 0.0
    %135 = vmatpush1.msra.mxu0 0.0
    %136 = vmatprep.subr.mxu0 0.0
    %137 = vmatpush1.msra.mxu0 0.0
    %138 = vmatprep.subr.mxu0 0.0
    %139 = vmatpush1.msra.mxu0 0.0
    %140 = vmatprep.subr.mxu0 0.0
    %141 = vmatpush1.msra.mxu0 0.0
    %142 = vmatprep.subr.mxu0 0.0
    %143 = vmatpush1.msra.mxu0 0.0
    %144 = vmatprep.subr.mxu0 0.0
    %145 = vmatpush1.msra.mxu0 0.0
    %146 = vmatprep.subr.mxu0 0.0
    %147 = vmatpush1.msra.mxu0 0.0
    %148 = vmatprep.subr.mxu0 0.0
    %149 = vmatpush1.msra.mxu0 0.0
    %150 = vmatprep.subr.mxu0 0.0
    %151 = vmatpush1.msra.mxu0 0.0
    %152 = vmatprep.subr.mxu0 0.0
    %153 = vmatpush1.msra.mxu0 0.0
    %154 = vmatprep.subr.mxu0 0.0
    %155 = vmatpush1.msra.mxu0 0.0
    %156 = vmatprep.subr.mxu0 0.0
    %157 = vmatpush1.msra.mxu0 0.0
    %158 = vmatprep.subr.mxu0 0.0
    %159 = vmatpush1.msra.mxu0 0.0
    %160 = vmatprep.subr.mxu0 0.0
    %161 = vmatpush1.msra.mxu0 0.0
    %162 = vmatprep.subr.mxu0 0.0
    %163 = vmatpush1.msra.mxu0 0.0
    %164 = vmatprep.subr.mxu0 0.0
    %165 = vmatpush1.msra.mxu0 0.0
    %166 = vmatprep.mubr.f32.mxu0 0.0
    %167 = vmatmul.mubr.f32.gmra.mrb[0].mxu0 %v80
    %v168 = vpop.f32.mrb[0].mxu0
    %v169 = vadd.f32 %v101, %v168
    %v170 = vpop.f32.mrb[0].mxu0
    %171 = vdwg.mxu0
    %v172 = vmax.f32 %v169, 0.0
    %v173 = vld [vmem:[#allocation7] sm:$0xff]
    %v174 = vld [vmem:[#allocation7 + $0x8] sm:$0xff]
    %v175 = vld [vmem:[#allocation7 + $0x10] sm:$0xff]
    %v176 = vld [vmem:[#allocation7 + $0x18] sm:$0xff]
    %v177 = vld [vmem:[#allocation7 + $0x20] sm:$0xff]
    %v178 = vld [vmem:[#allocation7 + $0x28] sm:$0xff]
    %v179 = vld [vmem:[#allocation7 + $0x30] sm:$0xff]
    %v180 = vld [vmem:[#allocation7 + $0x38] sm:$0xff]
    %v181 = vld [vmem:[#allocation7 + $0x40] sm:$0xff]
    %v182 = vld [vmem:[#allocation7 + $0x48] sm:$0xff]
    %v183 = vld [vmem:[#allocation7 + $0x50] sm:$0xff]
    %v184 = vld [vmem:[#allocation7 + $0x58] sm:$0xff]
    %v185 = vld [vmem:[#allocation7 + $0x60] sm:$0xff]
    %v186 = vld [vmem:[#allocation7 + $0x68] sm:$0xff]
    %v187 = vld [vmem:[#allocation7 + $0x70] sm:$0xff]
    %v188 = vld [vmem:[#allocation7 + $0x78] sm:$0xff]
    %v189 = vld [vmem:[%s3 + $0x1] sm:$0x1]
    %v190 = vlaneseq
    %v191 = vshrl.u32 %v190, 7
    %v192 = vsub.s32 0, %v191
    %v193 = vrot.slane %v189, %v192
    %194 = vmatprep.subr.mxu0 0.0
    %195 = vmatpush1.msra.mxu0 %v173
    %196 = vmatprep.subr.mxu0 0.0
    %197 = vmatpush1.msra.mxu0 %v174
    %198 = vmatprep.subr.mxu0 0.0
    %199 = vmatpush1.msra.mxu0 %v175
    %200 = vmatprep.subr.mxu0 0.0
    %201 = vmatpush1.msra.mxu0 %v176
    %202 = vmatprep.subr.mxu0 0.0
    %203 = vmatpush1.msra.mxu0 %v177
    %204 = vmatprep.subr.mxu0 0.0
    %205 = vmatpush1.msra.mxu0 %v178
    %206 = vmatprep.subr.mxu0 0.0
    %207 = vmatpush1.msra.mxu0 %v179
    %208 = vmatprep.subr.mxu0 0.0
    %209 = vmatpush1.msra.mxu0 %v180
    %210 = vmatprep.subr.mxu0 0.0
    %211 = vmatpush1.msra.mxu0 %v181
    %212 = vmatprep.subr.mxu0 0.0
    %213 = vmatpush1.msra.mxu0 %v182
    %214 = vmatprep.subr.mxu0 0.0
    %215 = vmatpush1.msra.mxu0 %v183
    %216 = vmatprep.subr.mxu0 0.0
    %217 = vmatpush1.msra.mxu0 %v184
    %218 = vmatprep.subr.mxu0 0.0
    %219 = vmatpush1.msra.mxu0 %v185
    %220 = vmatprep.subr.mxu0 0.0
    %221 = vmatpush1.msra.mxu0 %v186
    %222 = vmatprep.subr.mxu0 0.0
    %223 = vmatpush1.msra.mxu0 %v187
    %224 = vmatprep.subr.mxu0 0.0
    %225 = vmatpush1.msra.mxu0 %v188
    %226 = vmatprep.subr.mxu0 0.0
    %227 = vmatpush1.msra.mxu0 0.0
    %228 = vmatprep.subr.mxu0 0.0
    %229 = vmatpush1.msra.mxu0 0.0
    %230 = vmatprep.subr.mxu0 0.0
    %231 = vmatpush1.msra.mxu0 0.0
    %232 = vmatprep.subr.mxu0 0.0
    %233 = vmatpush1.msra.mxu0 0.0
    %234 = vmatprep.subr.mxu0 0.0
    %235 = vmatpush1.msra.mxu0 0.0
    %236 = vmatprep.subr.mxu0 0.0
    %237 = vmatpush1.msra.mxu0 0.0
    %238 = vmatprep.subr.mxu0 0.0
    %239 = vmatpush1.msra.mxu0 0.0
    %240 = vmatprep.subr.mxu0 0.0
    %241 = vmatpush1.msra.mxu0 0.0
    %242 = vmatprep.subr.mxu0 0.0
    %243 = vmatpush1.msra.mxu0 0.0
    %244 = vmatprep.subr.mxu0 0.0
    %245 = vmatpush1.msra.mxu0 0.0
    %246 = vmatprep.subr.mxu0 0.0
    %247 = vmatpush1.msra.mxu0 0.0
    %248 = vmatprep.subr.mxu0 0.0
    %249 = vmatpush1.msra.mxu0 0.0
    %250 = vmatprep.subr.mxu0 0.0
    %251 = vmatpush1.msra.mxu0 0.0
    %252 = vmatprep.subr.mxu0 0.0
    %253 = vmatpush1.msra.mxu0 0.0
    %254 = vmatprep.subr.mxu0 0.0
    %255 = vmatpush1.msra.mxu0 0.0
    %256 = vmatprep.subr.mxu0 0.0
    %257 = vmatpush1.msra.mxu0 0.0
    %258 = vmatprep.mubr.f32.mxu0 0.0
    %259 = vmatmul.mubr.f32.gmra.mrb[0].mxu0 %v172
    %v260 = vpop.f32.mrb[0].mxu0
    %v261 = vadd.f32 %v193, %v260
    %v262 = vpop.f32.mrb[0].mxu0
    %263 = vdwg.mxu0
    %v264 = vmax.f32 %v261, 0.0
    %265 = vst [vmem:[#allocation11] sm:$0xff] %v264
    %s266 = scalar_lea.vmem [#allocation7], 128
    %v267 = vld [vmem:[%s266] sm:$0xff]
    %v268 = vld [vmem:[%s266 + $0x8] sm:$0xff]
    %v269 = vld [vmem:[%s266 + $0x10] sm:$0xff]
    %v270 = vld [vmem:[%s266 + $0x18] sm:$0xff]
    %v271 = vld [vmem:[%s266 + $0x20] sm:$0xff]
    %v272 = vld [vmem:[%s266 + $0x28] sm:$0xff]
    %v273 = vld [vmem:[%s266 + $0x30] sm:$0xff]
    %v274 = vld [vmem:[%s266 + $0x38] sm:$0xff]
    %v275 = vld [vmem:[%s266 + $0x40] sm:$0xff]
    %v276 = vld [vmem:[%s266 + $0x48] sm:$0xff]
    %v277 = vld [vmem:[%s266 + $0x50] sm:$0xff]
    %v278 = vld [vmem:[%s266 + $0x58] sm:$0xff]
    %v279 = vld [vmem:[%s266 + $0x60] sm:$0xff]
    %v280 = vld [vmem:[%s266 + $0x68] sm:$0xff]
    %v281 = vld [vmem:[%s266 + $0x70] sm:$0xff]
    %v282 = vld [vmem:[%s266 + $0x78] sm:$0xff]
    %v283 = vld [vmem:[%s3 + $0x2] sm:$0x1]
    %v284 = vlaneseq
    %v285 = vshrl.u32 %v284, 7
    %v286 = vsub.s32 0, %v285
    %v287 = vrot.slane %v283, %v286
    %288 = vmatprep.subr.mxu0 0.0
    %289 = vmatpush1.msra.mxu0 %v267
    %290 = vmatprep.subr.mxu0 0.0
    %291 = vmatpush1.msra.mxu0 %v268
    %292 = vmatprep.subr.mxu0 0.0
    %293 = vmatpush1.msra.mxu0 %v269
    %294 = vmatprep.subr.mxu0 0.0
    %295 = vmatpush1.msra.mxu0 %v270
    %296 = vmatprep.subr.mxu0 0.0
    %297 = vmatpush1.msra.mxu0 %v271
    %298 = vmatprep.subr.mxu0 0.0
    %299 = vmatpush1.msra.mxu0 %v272
    %300 = vmatprep.subr.mxu0 0.0
    %301 = vmatpush1.msra.mxu0 %v273
    %302 = vmatprep.subr.mxu0 0.0
    %303 = vmatpush1.msra.mxu0 %v274
    %304 = vmatprep.subr.mxu0 0.0
    %305 = vmatpush1.msra.mxu0 %v275
    %306 = vmatprep.subr.mxu0 0.0
    %307 = vmatpush1.msra.mxu0 %v276
    %308 = vmatprep.subr.mxu0 0.0
    %309 = vmatpush1.msra.mxu0 %v277
    %310 = vmatprep.subr.mxu0 0.0
    %311 = vmatpush1.msra.mxu0 %v278
    %312 = vmatprep.subr.mxu0 0.0
    %313 = vmatpush1.msra.mxu0 %v279
    %314 = vmatprep.subr.mxu0 0.0
    %315 = vmatpush1.msra.mxu0 %v280
    %316 = vmatprep.subr.mxu0 0.0
    %317 = vmatpush1.msra.mxu0 %v281
    %318 = vmatprep.subr.mxu0 0.0
    %319 = vmatpush1.msra.mxu0 %v282
    %320 = vmatprep.subr.mxu0 0.0
    %321 = vmatpush1.msra.mxu0 0.0
    %322 = vmatprep.subr.mxu0 0.0
    %323 = vmatpush1.msra.mxu0 0.0
    %324 = vmatprep.subr.mxu0 0.0
    %325 = vmatpush1.msra.mxu0 0.0
    %326 = vmatprep.subr.mxu0 0.0
    %327 = vmatpush1.msra.mxu0 0.0
    %328 = vmatprep.subr.mxu0 0.0
    %329 = vmatpush1.msra.mxu0 0.0
    %330 = vmatprep.subr.mxu0 0.0
    %331 = vmatpush1.msra.mxu0 0.0
    %332 = vmatprep.subr.mxu0 0.0
    %333 = vmatpush1.msra.mxu0 0.0
    %334 = vmatprep.subr.mxu0 0.0
    %335 = vmatpush1.msra.mxu0 0.0
    %336 = vmatprep.subr.mxu0 0.0
    %337 = vmatpush1.msra.mxu0 0.0
    %338 = vmatprep.subr.mxu0 0.0
    %339 = vmatpush1.msra.mxu0 0.0
    %340 = vmatprep.subr.mxu0 0.0
    %341 = vmatpush1.msra.mxu0 0.0
    %342 = vmatprep.subr.mxu0 0.0
    %343 = vmatpush1.msra.mxu0 0.0
    %344 = vmatprep.subr.mxu0 0.0
    %345 = vmatpush1.msra.mxu0 0.0
    %346 = vmatprep.subr.mxu0 0.0
    %347 = vmatpush1.msra.mxu0 0.0
    %348 = vmatprep.subr.mxu0 0.0
    %349 = vmatpush1.msra.mxu0 0.0
    %350 = vmatprep.subr.mxu0 0.0
    %351 = vmatpush1.msra.mxu0 0.0
    %352 = vmatprep.mubr.f32.mxu0 0.0
    %353 = vmatmul.mubr.f32.gmra.mrb[0].mxu0 %v264
    %v354 = vpop.f32.mrb[0].mxu0
    %v355 = vadd.f32 %v287, %v354
    %v356 = vpop.f32.mrb[0].mxu0
    %357 = vdwg.mxu0
    %v358 = vmax.f32 %v355, 0.0
    %v359 = vld [vmem:[#allocation8] sm:$0xff]
    %v360 = vld [vmem:[#allocation8 + $0x8] sm:$0xff]
    %v361 = vld [vmem:[#allocation8 + $0x10] sm:$0xff]
    %v362 = vld [vmem:[#allocation8 + $0x18] sm:$0xff]
    %v363 = vld [vmem:[#allocation8 + $0x20] sm:$0xff]
    %v364 = vld [vmem:[#allocation8 + $0x28] sm:$0xff]
    %v365 = vld [vmem:[#allocation8 + $0x30] sm:$0xff]
    %v366 = vld [vmem:[#allocation8 + $0x38] sm:$0xff]
    %v367 = vld [vmem:[#allocation8 + $0x40] sm:$0xff]
    %v368 = vld [vmem:[#allocation8 + $0x48] sm:$0xff]
    %v369 = vld [vmem:[#allocation8 + $0x50] sm:$0xff]
    %v370 = vld [vmem:[#allocation8 + $0x58] sm:$0xff]
    %v371 = vld [vmem:[#allocation8 + $0x60] sm:$0xff]
    %v372 = vld [vmem:[#allocation8 + $0x68] sm:$0xff]
    %v373 = vld [vmem:[#allocation8 + $0x70] sm:$0xff]
    %v374 = vld [vmem:[#allocation8 + $0x78] sm:$0xff]
    %v375 = vld [vmem:[%s5] sm:$0x1]
    %v377 = vlaneseq
    %v378 = vshrl.u32 %v377, 7
    %v379 = vsub.s32 0, %v378
    %v380 = vrot.slane %v375, %v379
    %382 = vmatprep.subr.mxu0 0.0
    %383 = vmatpush1.msra.mxu0 %v359
    %384 = vmatprep.subr.mxu0 0.0
    %385 = vmatpush1.msra.mxu0 %v360
    %386 = vmatprep.subr.mxu0 0.0
    %387 = vmatpush1.msra.mxu0 %v361
    %388 = vmatprep.subr.mxu0 0.0
    %389 = vmatpush1.msra.mxu0 %v362
    %390 = vmatprep.subr.mxu0 0.0
    %391 = vmatpush1.msra.mxu0 %v363
    %392 = vmatprep.subr.mxu0 0.0
    %393 = vmatpush1.msra.mxu0 %v364
    %394 = vmatprep.subr.mxu0 0.0
    %395 = vmatpush1.msra.mxu0 %v365
    %396 = vmatprep.subr.mxu0 0.0
    %397 = vmatpush1.msra.mxu0 %v366
    %398 = vmatprep.subr.mxu0 0.0
    %399 = vmatpush1.msra.mxu0 %v367
    %400 = vmatprep.subr.mxu0 0.0
    %401 = vmatpush1.msra.mxu0 %v368
    %402 = vmatprep.subr.mxu0 0.0
    %403 = vmatpush1.msra.mxu0 %v369
    %404 = vmatprep.subr.mxu0 0.0
    %405 = vmatpush1.msra.mxu0 %v370
    %406 = vmatprep.subr.mxu0 0.0
    %407 = vmatpush1.msra.mxu0 %v371
    %408 = vmatprep.subr.mxu0 0.0
    %409 = vmatpush1.msra.mxu0 %v372
    %410 = vmatprep.subr.mxu0 0.0
    %411 = vmatpush1.msra.mxu0 %v373
    %412 = vmatprep.subr.mxu0 0.0
    %413 = vmatpush1.msra.mxu0 %v374
    %414 = vmatprep.subr.mxu0 0.0
    %415 = vmatpush1.msra.mxu0 0.0
    %416 = vmatprep.subr.mxu0 0.0
    %417 = vmatpush1.msra.mxu0 0.0
    %418 = vmatprep.subr.mxu0 0.0
    %419 = vmatpush1.msra.mxu0 0.0
    %420 = vmatprep.subr.mxu0 0.0
    %421 = vmatpush1.msra.mxu0 0.0
    %422 = vmatprep.subr.mxu0 0.0
    %423 = vmatpush1.msra.mxu0 0.0
    %424 = vmatprep.subr.mxu0 0.0
    %425 = vmatpush1.msra.mxu0 0.0
    %426 = vmatprep.subr.mxu0 0.0
    %427 = vmatpush1.msra.mxu0 0.0
    %428 = vmatprep.subr.mxu0 0.0
    %429 = vmatpush1.msra.mxu0 0.0
    %430 = vmatprep.subr.mxu0 0.0
    %431 = vmatpush1.msra.mxu0 0.0
    %432 = vmatprep.subr.mxu0 0.0
    %433 = vmatpush1.msra.mxu0 0.0
    %434 = vmatprep.subr.mxu0 0.0
    %435 = vmatpush1.msra.mxu0 0.0
    %436 = vmatprep.subr.mxu0 0.0
    %437 = vmatpush1.msra.mxu0 0.0
    %438 = vmatprep.subr.mxu0 0.0
    %439 = vmatpush1.msra.mxu0 0.0
    %440 = vmatprep.subr.mxu0 0.0
    %441 = vmatpush1.msra.mxu0 0.0
    %442 = vmatprep.subr.mxu0 0.0
    %443 = vmatpush1.msra.mxu0 0.0
    %444 = vmatprep.subr.mxu0 0.0
    %445 = vmatpush1.msra.mxu0 0.0
    %446 = vmatprep.mubr.f32.mxu0 0.0
    %447 = vmatmul.mubr.f32.gmra.mrb[0].mxu0 %v358
    %v448 = vpop.f32.mrb[0].mxu0
    %v449 = vadd.f32 %v380, %v448
    %v450 = vpop.f32.mrb[0].mxu0
    %451 = vdwg.mxu0
    %452 = vst [vmem:[#allocation10] sm:$0xff] %v449
    // Predicated region
    $region42: #{tpu_custom_call.1} parent=1 // pred_check
      _
    $region43: #{tpu_custom_call.1} parent=1 // pred_check_branch
      %454 = sbr.rel (0) target = $region45
    $region44: #{tpu_custom_call.1} parent=1 // pred_region
      %s456 = ssub.s32 128, 128
      %457 = vsyncadd [#allocation4], %s456
      %s459 = sshll.u32 [#allocation10], 4
      %s460 = int_to_ptr.vmem [resolvable:$true] %s459
      %462 = dma.vmem_to_hbm [thread:$0]  %s460, 128, %s6, [#allocation4]
    $region45: #{tpu_custom_call.1} parent=1 // pred_fallthru
      _
    // Predicated region
    $region46: #{tpu_custom_call.1} parent=1 // pred_check
      _
    $region47: #{tpu_custom_call.1} parent=1 // pred_check_branch
      %464 = sbr.rel (0) target = $region49
    $region48: #{tpu_custom_call.1} parent=1 // pred_region
      %s466 = ssub.s32 128, 128
      %467 = vsyncadd [#allocation12], %s466
      %s469 = sshll.u32 [#allocation11], 4
      %s470 = int_to_ptr.vmem [resolvable:$true] %s469
      %472 = dma.vmem_to_hbm [thread:$0]  %s470, 128, %s7, [#allocation12]
    $region49: #{tpu_custom_call.1} parent=1 // pred_fallthru
      _
    // Predicated region
    $region50: #{tpu_custom_call.1} parent=1 // pred_check
      _
    $region51: #{tpu_custom_call.1} parent=1 // pred_check_branch
      %474 = sbr.rel (0) target = $region53
    $region52: #{tpu_custom_call.1} parent=1 // pred_region
      %475 = dma.done [#allocation4], 128
    $region53: #{tpu_custom_call.1} parent=1 // pred_fallthru
      _
    // Predicated region
    $region54: #{tpu_custom_call.1} parent=1 // pred_check
      _
    $region55: #{tpu_custom_call.1} parent=1 // pred_check_branch
      %477 = sbr.rel (0) target = $region57
    $region56: #{tpu_custom_call.1} parent=1 // pred_region
      %478 = dma.done [#allocation12], 128
    $region57: #{tpu_custom_call.1} parent=1 // pred_fallthru
      _
    %479 = vsyncpa [#allocation3], 1
    %480 = vsyncpa [#allocation6], 1
    %481 = vsyncpa [#allocation9], 1
    %482 = vsyncpa [#allocation4], 1
    %483 = vsyncpa [#allocation12], 1

// kernel: tpu_custom_call.1
$region0: #{tpu_custom_call.1}
  #allocation0 [shape = 'u32[]', space=smem, size = 0x4, offset = 0x4, fixed_abs, tag = 'smem constant byte address 0x4 - core index']
  #allocation1 [shape = 'u32[144,128]{1,0:T(1,128)}', space=vmem, size = 0x12000, scoped, tag = 'internal scratch']
  %s0 = inlined_call_operand.hbm [shape: f32[8,128], index: 0, kind: input, shape index: {}]
  %s1 = inlined_call_operand.hbm [shape: f32[128,128], index: 1, kind: input, shape index: {}]
  %s2 = inlined_call_operand.hbm [shape: f32[2,128,128], index: 2, kind: input, shape index: {}]
  %s3 = inlined_call_operand.vmem [shape: f32[3,128], index: 3, kind: input, shape index: {}]
  %s4 = inlined_call_operand.hbm [shape: f32[128,128], index: 4, kind: input, shape index: {}]
  %s5 = inlined_call_operand.vmem [shape: f32[1,128], index: 5, kind: input, shape index: {}]
  %s6 = inlined_call_operand.hbm [shape: f32[8,128], index: 6, kind: output, shape index: {0}]
  %s7 = inlined_call_operand.hbm [shape: f32[8,128], index: 7, kind: output, shape index: {1}]
  %8 = xla_tuple %s6, %s7
  %s9 = sld [smem:[#allocation0]]
  $region58: #{tpu_custom_call.1} parent=0
    _
  %s11 = ssub.s32 1, %s9
  %s12 = scalar_select 0, %s11, %s9
  $region1: #{tpu_custom_call.1} parent=0
    #allocation2 [shape = 'u8[4096]{0}', space=vmem, size = 0x1000, scoped, tag = 'input window, operand 0, single buffered']
    #allocation3 [shape = 's32[1]{0}', space=sflag, size = 0x4, scoped, tag = 'scoped memory for tpu_custom_call.1']
    #allocation4 [shape = 's32[1]{0}', space=sflag, size = 0x4, scoped, tag = 'scoped memory for tpu_custom_call.1']
    #allocation5 [shape = 'u8[65536]{0}', space=vmem, size = 0x10000, scoped, tag = 'input window, operand 1, single buffered']
    #allocation6 [shape = 's32[1]{0}', space=sflag, size = 0x4, scoped, tag = 'scoped memory for tpu_custom_call.1']
    #allocation7 [shape = 'u8[131072]{0}', space=vmem, size = 0x20000, scoped, tag = 'input window, operand 2, single buffered']
    #allocation8 [shape = 'u8[65536]{0}', space=vmem, size = 0x10000, scoped, tag = 'input window, operand 4, single buffered']
    #allocation9 [shape = 's32[1]{0}', space=sflag, size = 0x4, scoped, tag = 'scoped memory for tpu_custom_call.1']
    #allocation10 [shape = 'u8[4096]{0}', space=vmem, size = 0x1000, scoped, tag = 'output window, operand 0, single buffered']
    #allocation11 [shape = 'u8[4096]{0}', space=vmem, size = 0x1000, scoped, tag = 'output window, operand 1, single buffered']
    #allocation12 [shape = 's32[1]{0}', space=sflag, size = 0x4, scoped, tag = 'scoped memory for tpu_custom_call.1']
    %13 = vsyncpa [#allocation3], 0
    %14 = vsyncpa [#allocation6], 0
    %15 = vsyncpa [#allocation9], 0
    %16 = vsyncpa [#allocation4], 0
    %17 = vsyncpa [#allocation12], 0
    // Predicated region
    $region2: #{tpu_custom_call.1} parent=1 // pred_check
      _
    $region3: #{tpu_custom_call.1} parent=1 // pred_check_branch
      %19 = sbr.rel (0) target = $region5
    $region4: #{tpu_custom_call.1} parent=1 // pred_region
      %s21 = ssub.s32 128, 128
      %22 = vsyncadd [#allocation3], %s21
      %s24 = sshll.u32 [#allocation2], 4
      %s25 = int_to_ptr.vmem [resolvable:$true] %s24
      %27 = dma.hbm_to_vmem [thread:$0]  %s0, 128, %s25, [#allocation3]
    $region5: #{tpu_custom_call.1} parent=1 // pred_fallthru
      _
    // Predicated region
    $region6: #{tpu_custom_call.1} parent=1 // pred_check
      _
    $region7: #{tpu_custom_call.1} parent=1 // pred_check_branch
      %29 = sbr.rel (0) target = $region9
    $region8: #{tpu_custom_call.1} parent=1 // pred_region
      %s31 = ssub.s32 2048, 2048
      %32 = vsyncadd [#allocation6], %s31
      %s33 = sshll.u32 [#allocation5], 4
      %s34 = int_to_ptr.vmem [resolvable:$true] %s33
      %39 = dma.hbm_to_vmem [thread:$0]  %s1, 2048, %s34, [#allocation6], 128, 128, 8
    $region9: #{tpu_custom_call.1} parent=1 // pred_fallthru
      _
    // Predicated region
    $region10: #{tpu_custom_call.1} parent=1 // pred_check
      _
    $region11: #{tpu_custom_call.1} parent=1 // pred_check_branch
      %41 = sbr.rel (0) target = $region13
    $region12: #{tpu_custom_call.1} parent=1 // pred_region
      %s43 = ssub.s32 4096, 4096
      %44 = vsyncadd [#allocation6], %s43
      %s45 = sshll.u32 [#allocation7], 4
      %s46 = int_to_ptr.vmem [resolvable:$true] %s45
      %51 = dma.hbm_to_vmem [thread:$0]  %s2, 4096, %s46, [#allocation6], 128, 128, 8
    $region13: #{tpu_custom_call.1} parent=1 // pred_fallthru
      _
    // Predicated region
    $region14: #{tpu_custom_call.1} parent=1 // pred_check
      _
    $region15: #{tpu_custom_call.1} parent=1 // pred_check_branch
      %53 = sbr.rel (0) target = $region17
    $region16: #{tpu_custom_call.1} parent=1 // pred_region
      _
    $region17: #{tpu_custom_call.1} parent=1 // pred_fallthru
      _
    // Predicated region
    $region18: #{tpu_custom_call.1} parent=1 // pred_check
      _
    $region19: #{tpu_custom_call.1} parent=1 // pred_check_branch
      %55 = sbr.rel (0) target = $region21
    $region20: #{tpu_custom_call.1} parent=1 // pred_region
      %s57 = ssub.s32 2048, 2048
      %58 = vsyncadd [#allocation9], %s57
      %s59 = sshll.u32 [#allocation8], 4
      %s60 = int_to_ptr.vmem [resolvable:$true] %s59
      %65 = dma.hbm_to_vmem [thread:$0]  %s4, 2048, %s60, [#allocation9], 128, 128, 8
    $region21: #{tpu_custom_call.1} parent=1 // pred_fallthru
      _
    // Predicated region
    $region22: #{tpu_custom_call.1} parent=1 // pred_check
      _
    $region23: #{tpu_custom_call.1} parent=1 // pred_check_branch
      %67 = sbr.rel (0) target = $region25
    $region24: #{tpu_custom_call.1} parent=1 // pred_region
      _
    $region25: #{tpu_custom_call.1} parent=1 // pred_fallthru
      _
    // Predicated region
    $region26: #{tpu_custom_call.1} parent=1 // pred_check
      _
    $region27: #{tpu_custom_call.1} parent=1 // pred_check_branch
      %69 = sbr.rel (0) target = $region29
    $region28: #{tpu_custom_call.1} parent=1 // pred_region
      %70 = dma.done [#allocation3], 128
    $region29: #{tpu_custom_call.1} parent=1 // pred_fallthru
      _
    // Predicated region
    $region30: #{tpu_custom_call.1} parent=1 // pred_check
      _
    $region31: #{tpu_custom_call.1} parent=1 // pred_check_branch
      %72 = sbr.rel (0) target = $region33
    $region32: #{tpu_custom_call.1} parent=1 // pred_region
      %73 = dma.done [#allocation6], 2048
    $region33: #{tpu_custom_call.1} parent=1 // pred_fallthru
      _
    // Predicated region
    $region34: #{tpu_custom_call.1} parent=1 // pred_check
      _
    $region35: #{tpu_custom_call.1} parent=1 // pred_check_branch
      %75 = sbr.rel (0) target = $region37
    $region36: #{tpu_custom_call.1} parent=1 // pred_region
      %76 = dma.done [#allocation6], 4096
    $region37: #{tpu_custom_call.1} parent=1 // pred_fallthru
      _
    // Predicated region
    $region38: #{tpu_custom_call.1} parent=1 // pred_check
      _
    $region39: #{tpu_custom_call.1} parent=1 // pred_check_branch
      %78 = sbr.rel (0) target = $region41
    $region40: #{tpu_custom_call.1} parent=1 // pred_region
      %79 = dma.done [#allocation9], 2048
    $region41: #{tpu_custom_call.1} parent=1 // pred_fallthru
      _
    %v80 = vld [vmem:[#allocation2] sm:$0xff]
    %v81 = vld [vmem:[#allocation5] sm:$0xff]
    %v82 = vld [vmem:[#allocation5 + $0x8] sm:$0xff]
    %v83 = vld [vmem:[#allocation5 + $0x10] sm:$0xff]
    %v84 = vld [vmem:[#allocation5 + $0x18] sm:$0xff]
    %v85 = vld [vmem:[#allocation5 + $0x20] sm:$0xff]
    %v86 = vld [vmem:[#allocation5 + $0x28] sm:$0xff]
    %v87 = vld [vmem:[#allocation5 + $0x30] sm:$0xff]
    %v88 = vld [vmem:[#allocation5 + $0x38] sm:$0xff]
    %v89 = vld [vmem:[#allocation5 + $0x40] sm:$0xff]
    %v90 = vld [vmem:[#allocation5 + $0x48] sm:$0xff]
    %v91 = vld [vmem:[#allocation5 + $0x50] sm:$0xff]
    %v92 = vld [vmem:[#allocation5 + $0x58] sm:$0xff]
    %v93 = vld [vmem:[#allocation5 + $0x60] sm:$0xff]
    %v94 = vld [vmem:[#allocation5 + $0x68] sm:$0xff]
    %v95 = vld [vmem:[#allocation5 + $0x70] sm:$0xff]
    %v96 = vld [vmem:[#allocation5 + $0x78] sm:$0xff]
    %v97 = vld [vmem:[%s3] sm:$0x1]
    %v98 = vlaneseq
    %v99 = vshrl.u32 %v98, 7
    %v100 = vsub.s32 0, %v99
    %v101 = vrot.slane %v97, %v100
    %102 = vmatprep.subr.mxu0 0.0
    %103 = vmatpush1.msra.mxu0 %v81
    %104 = vmatprep.subr.mxu0 0.0
    %105 = vmatpush1.msra.mxu0 %v82
    %106 = vmatprep.subr.mxu0 0.0
    %107 = vmatpush1.msra.mxu0 %v83
    %108 = vmatprep.subr.mxu0 0.0
    %109 = vmatpush1.msra.mxu0 %v84
    %110 = vmatprep.subr.mxu0 0.0
    %111 = vmatpush1.msra.mxu0 %v85
    %112 = vmatprep.subr.mxu0 0.0
    %113 = vmatpush1.msra.mxu0 %v86
    %114 = vmatprep.subr.mxu0 0.0
    %115 = vmatpush1.msra.mxu0 %v87
    %116 = vmatprep.subr.mxu0 0.0
    %117 = vmatpush1.msra.mxu0 %v88
    %118 = vmatprep.subr.mxu0 0.0
    %119 = vmatpush1.msra.mxu0 %v89
    %120 = vmatprep.subr.mxu0 0.0
    %121 = vmatpush1.msra.mxu0 %v90
    %122 = vmatprep.subr.mxu0 0.0
    %123 = vmatpush1.msra.mxu0 %v91
    %124 = vmatprep.subr.mxu0 0.0
    %125 = vmatpush1.msra.mxu0 %v92
    %126 = vmatprep.subr.mxu0 0.0
    %127 = vmatpush1.msra.mxu0 %v93
    %128 = vmatprep.subr.mxu0 0.0
    %129 = vmatpush1.msra.mxu0 %v94
    %130 = vmatprep.subr.mxu0 0.0
    %131 = vmatpush1.msra.mxu0 %v95
    %132 = vmatprep.subr.mxu0 0.0
    %133 = vmatpush1.msra.mxu0 %v96
    %134 = vmatprep.subr.mxu0 0.0
    %135 = vmatpush1.msra.mxu0 0.0
    %136 = vmatprep.subr.mxu0 0.0
    %137 = vmatpush1.msra.mxu0 0.0
    %138 = vmatprep.subr.mxu0 0.0
    %139 = vmatpush1.msra.mxu0 0.0
    %140 = vmatprep.subr.mxu0 0.0
    %141 = vmatpush1.msra.mxu0 0.0
    %142 = vmatprep.subr.mxu0 0.0
    %143 = vmatpush1.msra.mxu0 0.0
    %144 = vmatprep.subr.mxu0 0.0
    %145 = vmatpush1.msra.mxu0 0.0
    %146 = vmatprep.subr.mxu0 0.0
    %147 = vmatpush1.msra.mxu0 0.0
    %148 = vmatprep.subr.mxu0 0.0
    %149 = vmatpush1.msra.mxu0 0.0
    %150 = vmatprep.subr.mxu0 0.0
    %151 = vmatpush1.msra.mxu0 0.0
    %152 = vmatprep.subr.mxu0 0.0
    %153 = vmatpush1.msra.mxu0 0.0
    %154 = vmatprep.subr.mxu0 0.0
    %155 = vmatpush1.msra.mxu0 0.0
    %156 = vmatprep.subr.mxu0 0.0
    %157 = vmatpush1.msra.mxu0 0.0
    %158 = vmatprep.subr.mxu0 0.0
    %159 = vmatpush1.msra.mxu0 0.0
    %160 = vmatprep.subr.mxu0 0.0
    %161 = vmatpush1.msra.mxu0 0.0
    %162 = vmatprep.subr.mxu0 0.0
    %163 = vmatpush1.msra.mxu0 0.0
    %164 = vmatprep.subr.mxu0 0.0
    %165 = vmatpush1.msra.mxu0 0.0
    %166 = vmatprep.mubr.f32.mxu0 0.0
    %167 = vmatmul.mubr.f32.gmra.mrb[0].mxu0 %v80
    %v168 = vpop.f32.mrb[0].mxu0
    %v169 = vadd.f32 %v101, %v168
    %v170 = vpop.f32.mrb[0].mxu0
    %171 = vdwg.mxu0
    %v172 = vmax.f32 %v169, 0.0
    %v173 = vld [vmem:[#allocation7] sm:$0xff]
    %v174 = vld [vmem:[#allocation7 + $0x8] sm:$0xff]
    %v175 = vld [vmem:[#allocation7 + $0x10] sm:$0xff]
    %v176 = vld [vmem:[#allocation7 + $0x18] sm:$0xff]
    %v177 = vld [vmem:[#allocation7 + $0x20] sm:$0xff]
    %v178 = vld [vmem:[#allocation7 + $0x28] sm:$0xff]
    %v179 = vld [vmem:[#allocation7 + $0x30] sm:$0xff]
    %v180 = vld [vmem:[#allocation7 + $0x38] sm:$0xff]
    %v181 = vld [vmem:[#allocation7 + $0x40] sm:$0xff]
    %v182 = vld [vmem:[#allocation7 + $0x48] sm:$0xff]
    %v183 = vld [vmem:[#allocation7 + $0x50] sm:$0xff]
    %v184 = vld [vmem:[#allocation7 + $0x58] sm:$0xff]
    %v185 = vld [vmem:[#allocation7 + $0x60] sm:$0xff]
    %v186 = vld [vmem:[#allocation7 + $0x68] sm:$0xff]
    %v187 = vld [vmem:[#allocation7 + $0x70] sm:$0xff]
    %v188 = vld [vmem:[#allocation7 + $0x78] sm:$0xff]
    %v189 = vld [vmem:[%s3 + $0x1] sm:$0x1]
    %v190 = vlaneseq
    %v191 = vshrl.u32 %v190, 7
    %v192 = vsub.s32 0, %v191
    %v193 = vrot.slane %v189, %v192
    %194 = vmatprep.subr.mxu0 0.0
    %195 = vmatpush1.msra.mxu0 %v173
    %196 = vmatprep.subr.mxu0 0.0
    %197 = vmatpush1.msra.mxu0 %v174
    %198 = vmatprep.subr.mxu0 0.0
    %199 = vmatpush1.msra.mxu0 %v175
    %200 = vmatprep.subr.mxu0 0.0
    %201 = vmatpush1.msra.mxu0 %v176
    %202 = vmatprep.subr.mxu0 0.0
    %203 = vmatpush1.msra.mxu0 %v177
    %204 = vmatprep.subr.mxu0 0.0
    %205 = vmatpush1.msra.mxu0 %v178
    %206 = vmatprep.subr.mxu0 0.0
    %207 = vmatpush1.msra.mxu0 %v179
    %208 = vmatprep.subr.mxu0 0.0
    %209 = vmatpush1.msra.mxu0 %v180
    %210 = vmatprep.subr.mxu0 0.0
    %211 = vmatpush1.msra.mxu0 %v181
    %212 = vmatprep.subr.mxu0 0.0
    %213 = vmatpush1.msra.mxu0 %v182
    %214 = vmatprep.subr.mxu0 0.0
    %215 = vmatpush1.msra.mxu0 %v183
    %216 = vmatprep.subr.mxu0 0.0
    %217 = vmatpush1.msra.mxu0 %v184
    %218 = vmatprep.subr.mxu0 0.0
    %219 = vmatpush1.msra.mxu0 %v185
    %220 = vmatprep.subr.mxu0 0.0
    %221 = vmatpush1.msra.mxu0 %v186
    %222 = vmatprep.subr.mxu0 0.0
    %223 = vmatpush1.msra.mxu0 %v187
    %224 = vmatprep.subr.mxu0 0.0
    %225 = vmatpush1.msra.mxu0 %v188
    %226 = vmatprep.subr.mxu0 0.0
    %227 = vmatpush1.msra.mxu0 0.0
    %228 = vmatprep.subr.mxu0 0.0
    %229 = vmatpush1.msra.mxu0 0.0
    %230 = vmatprep.subr.mxu0 0.0
    %231 = vmatpush1.msra.mxu0 0.0
    %232 = vmatprep.subr.mxu0 0.0
    %233 = vmatpush1.msra.mxu0 0.0
    %234 = vmatprep.subr.mxu0 0.0
    %235 = vmatpush1.msra.mxu0 0.0
    %236 = vmatprep.subr.mxu0 0.0
    %237 = vmatpush1.msra.mxu0 0.0
    %238 = vmatprep.subr.mxu0 0.0
    %239 = vmatpush1.msra.mxu0 0.0
    %240 = vmatprep.subr.mxu0 0.0
    %241 = vmatpush1.msra.mxu0 0.0
    %242 = vmatprep.subr.mxu0 0.0
    %243 = vmatpush1.msra.mxu0 0.0
    %244 = vmatprep.subr.mxu0 0.0
    %245 = vmatpush1.msra.mxu0 0.0
    %246 = vmatprep.subr.mxu0 0.0
    %247 = vmatpush1.msra.mxu0 0.0
    %248 = vmatprep.subr.mxu0 0.0
    %249 = vmatpush1.msra.mxu0 0.0
    %250 = vmatprep.subr.mxu0 0.0
    %251 = vmatpush1.msra.mxu0 0.0
    %252 = vmatprep.subr.mxu0 0.0
    %253 = vmatpush1.msra.mxu0 0.0
    %254 = vmatprep.subr.mxu0 0.0
    %255 = vmatpush1.msra.mxu0 0.0
    %256 = vmatprep.subr.mxu0 0.0
    %257 = vmatpush1.msra.mxu0 0.0
    %258 = vmatprep.mubr.f32.mxu0 0.0
    %259 = vmatmul.mubr.f32.gmra.mrb[0].mxu0 %v172
    %v260 = vpop.f32.mrb[0].mxu0
    %v261 = vadd.f32 %v193, %v260
    %v262 = vpop.f32.mrb[0].mxu0
    %263 = vdwg.mxu0
    %v264 = vmax.f32 %v261, 0.0
    %265 = vst [vmem:[#allocation11] sm:$0xff] %v264
    %s266 = scalar_lea.vmem [#allocation7], 128
    %v267 = vld [vmem:[%s266] sm:$0xff]
    %v268 = vld [vmem:[%s266 + $0x8] sm:$0xff]
    %v269 = vld [vmem:[%s266 + $0x10] sm:$0xff]
    %v270 = vld [vmem:[%s266 + $0x18] sm:$0xff]
    %v271 = vld [vmem:[%s266 + $0x20] sm:$0xff]
    %v272 = vld [vmem:[%s266 + $0x28] sm:$0xff]
    %v273 = vld [vmem:[%s266 + $0x30] sm:$0xff]
    %v274 = vld [vmem:[%s266 + $0x38] sm:$0xff]
    %v275 = vld [vmem:[%s266 + $0x40] sm:$0xff]
    %v276 = vld [vmem:[%s266 + $0x48] sm:$0xff]
    %v277 = vld [vmem:[%s266 + $0x50] sm:$0xff]
    %v278 = vld [vmem:[%s266 + $0x58] sm:$0xff]
    %v279 = vld [vmem:[%s266 + $0x60] sm:$0xff]
    %v280 = vld [vmem:[%s266 + $0x68] sm:$0xff]
    %v281 = vld [vmem:[%s266 + $0x70] sm:$0xff]
    %v282 = vld [vmem:[%s266 + $0x78] sm:$0xff]
    %v283 = vld [vmem:[%s3 + $0x2] sm:$0x1]
    %v284 = vlaneseq
    %v285 = vshrl.u32 %v284, 7
    %v286 = vsub.s32 0, %v285
    %v287 = vrot.slane %v283, %v286
    %288 = vmatprep.subr.mxu0 0.0
    %289 = vmatpush1.msra.mxu0 %v267
    %290 = vmatprep.subr.mxu0 0.0
    %291 = vmatpush1.msra.mxu0 %v268
    %292 = vmatprep.subr.mxu0 0.0
    %293 = vmatpush1.msra.mxu0 %v269
    %294 = vmatprep.subr.mxu0 0.0
    %295 = vmatpush1.msra.mxu0 %v270
    %296 = vmatprep.subr.mxu0 0.0
    %297 = vmatpush1.msra.mxu0 %v271
    %298 = vmatprep.subr.mxu0 0.0
    %299 = vmatpush1.msra.mxu0 %v272
    %300 = vmatprep.subr.mxu0 0.0
    %301 = vmatpush1.msra.mxu0 %v273
    %302 = vmatprep.subr.mxu0 0.0
    %303 = vmatpush1.msra.mxu0 %v274
    %304 = vmatprep.subr.mxu0 0.0
    %305 = vmatpush1.msra.mxu0 %v275
    %306 = vmatprep.subr.mxu0 0.0
    %307 = vmatpush1.msra.mxu0 %v276
    %308 = vmatprep.subr.mxu0 0.0
    %309 = vmatpush1.msra.mxu0 %v277
    %310 = vmatprep.subr.mxu0 0.0
    %311 = vmatpush1.msra.mxu0 %v278
    %312 = vmatprep.subr.mxu0 0.0
    %313 = vmatpush1.msra.mxu0 %v279
    %314 = vmatprep.subr.mxu0 0.0
    %315 = vmatpush1.msra.mxu0 %v280
    %316 = vmatprep.subr.mxu0 0.0
    %317 = vmatpush1.msra.mxu0 %v281
    %318 = vmatprep.subr.mxu0 0.0
    %319 = vmatpush1.msra.mxu0 %v282
    %320 = vmatprep.subr.mxu0 0.0
    %321 = vmatpush1.msra.mxu0 0.0
    %322 = vmatprep.subr.mxu0 0.0
    %323 = vmatpush1.msra.mxu0 0.0
    %324 = vmatprep.subr.mxu0 0.0
    %325 = vmatpush1.msra.mxu0 0.0
    %326 = vmatprep.subr.mxu0 0.0
    %327 = vmatpush1.msra.mxu0 0.0
    %328 = vmatprep.subr.mxu0 0.0
    %329 = vmatpush1.msra.mxu0 0.0
    %330 = vmatprep.subr.mxu0 0.0
    %331 = vmatpush1.msra.mxu0 0.0
    %332 = vmatprep.subr.mxu0 0.0
    %333 = vmatpush1.msra.mxu0 0.0
    %334 = vmatprep.subr.mxu0 0.0
    %335 = vmatpush1.msra.mxu0 0.0
    %336 = vmatprep.subr.mxu0 0.0
    %337 = vmatpush1.msra.mxu0 0.0
    %338 = vmatprep.subr.mxu0 0.0
    %339 = vmatpush1.msra.mxu0 0.0
    %340 = vmatprep.subr.mxu0 0.0
    %341 = vmatpush1.msra.mxu0 0.0
    %342 = vmatprep.subr.mxu0 0.0
    %343 = vmatpush1.msra.mxu0 0.0
    %344 = vmatprep.subr.mxu0 0.0
    %345 = vmatpush1.msra.mxu0 0.0
    %346 = vmatprep.subr.mxu0 0.0
    %347 = vmatpush1.msra.mxu0 0.0
    %348 = vmatprep.subr.mxu0 0.0
    %349 = vmatpush1.msra.mxu0 0.0
    %350 = vmatprep.subr.mxu0 0.0
    %351 = vmatpush1.msra.mxu0 0.0
    %352 = vmatprep.mubr.f32.mxu0 0.0
    %353 = vmatmul.mubr.f32.gmra.mrb[0].mxu0 %v264
    %v354 = vpop.f32.mrb[0].mxu0
    %v355 = vadd.f32 %v287, %v354
    %v356 = vpop.f32.mrb[0].mxu0
    %357 = vdwg.mxu0
    %v358 = vmax.f32 %v355, 0.0
    %v359 = vld [vmem:[#allocation8] sm:$0xff]
    %v360 = vld [vmem:[#allocation8 + $0x8] sm:$0xff]
    %v361 = vld [vmem:[#allocation8 + $0x10] sm:$0xff]
    %v362 = vld [vmem:[#allocation8 + $0x18] sm:$0xff]
    %v363 = vld [vmem:[#allocation8 + $0x20] sm:$0xff]
    %v364 = vld [vmem:[#allocation8 + $0x28] sm:$0xff]
    %v365 = vld [vmem:[#allocation8 + $0x30] sm:$0xff]
    %v366 = vld [vmem:[#allocation8 + $0x38] sm:$0xff]
    %v367 = vld [vmem:[#allocation8 + $0x40] sm:$0xff]
    %v368 = vld [vmem:[#allocation8 + $0x48] sm:$0xff]
    %v369 = vld [vmem:[#allocation8 + $0x50] sm:$0xff]
    %v370 = vld [vmem:[#allocation8 + $0x58] sm:$0xff]
    %v371 = vld [vmem:[#allocation8 + $0x60] sm:$0xff]
    %v372 = vld [vmem:[#allocation8 + $0x68] sm:$0xff]
    %v373 = vld [vmem:[#allocation8 + $0x70] sm:$0xff]
    %v374 = vld [vmem:[#allocation8 + $0x78] sm:$0xff]
    %v375 = vld [vmem:[%s5] sm:$0x1]
    %v377 = vlaneseq
    %v378 = vshrl.u32 %v377, 7
    %v379 = vsub.s32 0, %v378
    %v380 = vrot.slane %v375, %v379
    %382 = vmatprep.subr.mxu0 0.0
    %383 = vmatpush1.msra.mxu0 %v359
    %384 = vmatprep.subr.mxu0 0.0
    %385 = vmatpush1.msra.mxu0 %v360
    %386 = vmatprep.subr.mxu0 0.0
    %387 = vmatpush1.msra.mxu0 %v361
    %388 = vmatprep.subr.mxu0 0.0
    %389 = vmatpush1.msra.mxu0 %v362
    %390 = vmatprep.subr.mxu0 0.0
    %391 = vmatpush1.msra.mxu0 %v363
    %392 = vmatprep.subr.mxu0 0.0
    %393 = vmatpush1.msra.mxu0 %v364
    %394 = vmatprep.subr.mxu0 0.0
    %395 = vmatpush1.msra.mxu0 %v365
    %396 = vmatprep.subr.mxu0 0.0
    %397 = vmatpush1.msra.mxu0 %v366
    %398 = vmatprep.subr.mxu0 0.0
    %399 = vmatpush1.msra.mxu0 %v367
    %400 = vmatprep.subr.mxu0 0.0
    %401 = vmatpush1.msra.mxu0 %v368
    %402 = vmatprep.subr.mxu0 0.0
    %403 = vmatpush1.msra.mxu0 %v369
    %404 = vmatprep.subr.mxu0 0.0
    %405 = vmatpush1.msra.mxu0 %v370
    %406 = vmatprep.subr.mxu0 0.0
    %407 = vmatpush1.msra.mxu0 %v371
    %408 = vmatprep.subr.mxu0 0.0
    %409 = vmatpush1.msra.mxu0 %v372
    %410 = vmatprep.subr.mxu0 0.0
    %411 = vmatpush1.msra.mxu0 %v373
    %412 = vmatprep.subr.mxu0 0.0
    %413 = vmatpush1.msra.mxu0 %v374
    %414 = vmatprep.subr.mxu0 0.0
    %415 = vmatpush1.msra.mxu0 0.0
    %416 = vmatprep.subr.mxu0 0.0
    %417 = vmatpush1.msra.mxu0 0.0
    %418 = vmatprep.subr.mxu0 0.0
    %419 = vmatpush1.msra.mxu0 0.0
    %420 = vmatprep.subr.mxu0 0.0
    %421 = vmatpush1.msra.mxu0 0.0
    %422 = vmatprep.subr.mxu0 0.0
    %423 = vmatpush1.msra.mxu0 0.0
    %424 = vmatprep.subr.mxu0 0.0
    %425 = vmatpush1.msra.mxu0 0.0
    %426 = vmatprep.subr.mxu0 0.0
    %427 = vmatpush1.msra.mxu0 0.0
    %428 = vmatprep.subr.mxu0 0.0
    %429 = vmatpush1.msra.mxu0 0.0
    %430 = vmatprep.subr.mxu0 0.0
    %431 = vmatpush1.msra.mxu0 0.0
    %432 = vmatprep.subr.mxu0 0.0
    %433 = vmatpush1.msra.mxu0 0.0
    %434 = vmatprep.subr.mxu0 0.0
    %435 = vmatpush1.msra.mxu0 0.0
    %436 = vmatprep.subr.mxu0 0.0
    %437 = vmatpush1.msra.mxu0 0.0
    %438 = vmatprep.subr.mxu0 0.0
    %439 = vmatpush1.msra.mxu0 0.0
    %440 = vmatprep.subr.mxu0 0.0
    %441 = vmatpush1.msra.mxu0 0.0
    %442 = vmatprep.subr.mxu0 0.0
    %443 = vmatpush1.msra.mxu0 0.0
    %444 = vmatprep.subr.mxu0 0.0
    %445 = vmatpush1.msra.mxu0 0.0
    %446 = vmatprep.mubr.f32.mxu0 0.0
    %447 = vmatmul.mubr.f32.gmra.mrb[0].mxu0 %v358
    %v448 = vpop.f32.mrb[0].mxu0
    %v449 = vadd.f32 %v380, %v448
    %v450 = vpop.f32.mrb[0].mxu0
    %451 = vdwg.mxu0
    %452 = vst [vmem:[#allocation10] sm:$0xff] %v449
    // Predicated region
    $region42: #{tpu_custom_call.1} parent=1 // pred_check
      _
    $region43: #{tpu_custom_call.1} parent=1 // pred_check_branch
      %454 = sbr.rel (0) target = $region45
    $region44: #{tpu_custom_call.1} parent=1 // pred_region
      %s456 = ssub.s32 128, 128
      %457 = vsyncadd [#allocation4], %s456
      %s459 = sshll.u32 [#allocation10], 4
      %s460 = int_to_ptr.vmem [resolvable:$true] %s459
      %462 = dma.vmem_to_hbm [thread:$0]  %s460, 128, %s6, [#allocation4]
    $region45: #{tpu_custom_call.1} parent=1 // pred_fallthru
      _
    // Predicated region
    $region46: #{tpu_custom_call.1} parent=1 // pred_check
      _
    $region47: #{tpu_custom_call.1} parent=1 // pred_check_branch
      %464 = sbr.rel (0) target = $region49
    $region48: #{tpu_custom_call.1} parent=1 // pred_region
      %s466 = ssub.s32 128, 128
      %467 = vsyncadd [#allocation12], %s466
      %s469 = sshll.u32 [#allocation11], 4
      %s470 = int_to_ptr.vmem [resolvable:$true] %s469
      %472 = dma.vmem_to_hbm [thread:$0]  %s470, 128, %s7, [#allocation12]
    $region49: #{tpu_custom_call.1} parent=1 // pred_fallthru
      _
    // Predicated region
    $region50: #{tpu_custom_call.1} parent=1 // pred_check
      _
    $region51: #{tpu_custom_call.1} parent=1 // pred_check_branch
      %474 = sbr.rel (0) target = $region53
    $region52: #{tpu_custom_call.1} parent=1 // pred_region
      %475 = dma.done [#allocation4], 128
    $region53: #{tpu_custom_call.1} parent=1 // pred_fallthru
      _
    // Predicated region
    $region54: #{tpu_custom_call.1} parent=1 // pred_check
      _
    $region55: #{tpu_custom_call.1} parent=1 // pred_check_branch
      %477 = sbr.rel (0) target = $region57
    $region56: #{tpu_custom_call.1} parent=1 // pred_region
      %478 = dma.done [#allocation12], 128
    $region57: #{tpu_custom_call.1} parent=1 // pred_fallthru
      _
    %479 = vsyncpa [#allocation3], 1
    %480 = vsyncpa [#allocation6], 1
    %481 = vsyncpa [#allocation9], 1
    %482 = vsyncpa [#allocation4], 1
    %483 = vsyncpa [#allocation12], 1

</llo_original>
